<compile_context>
chip_gen: v7x
topology: tpu7x:2x2x1
jax: 0.10.0
libtpu: 0.0.40
codegen_flags: <defaults>
</compile_context>

<pallas_src>
import jax
import jax.numpy as jnp
import numpy as np
from jax.experimental import pallas as pl
from jax.experimental.pallas import tpu as pltpu

EPS = 1e-5
LANE = 128
MM_PRECISION = jax.lax.Precision.HIGHEST   # fp32 parity with PyTorch conv/linear


# --------------------------- Fused Pallas kernel -----------------------------

def net_kernel(p_ref, wconv_ref,            # inputs
               conv_ref, bn_ref, stats_ref):  # outputs
    """conv1 + (relu fused into) 2x2 maxpool + bn1, fully VMEM-resident.

    p_ref:     (4*PH*PW*B, KP)  im2col patches, rows ordered (dy, dx, ph, pw, b)
    wconv_ref: (KP, CP)         padded conv weight (cols = padded Cout)
    conv_ref:  (4*PH*PW*B, CP)  conv1 slab (pre-relu) for the debug intermediates
    bn_ref:    (PH*PW*B, CP)    bn1 slab, rows ordered (ph, pw, b)
    stats_ref: (2, CP)          row 0 = per-channel mean, row 1 = rsqrt(var+eps)
    """
    rows_p = bn_ref.shape[0]                  # PH*PW*B pooled rows

    # conv1: one MXU matmul on the padded im2col patches (lane-dense output).
    acc = jnp.dot(p_ref[...], wconv_ref[...],
                  preferred_element_type=jnp.float32, precision=MM_PRECISION)
    conv_ref[...] = acc

    # 2x2 max-pool over the four contiguous (dy, dx) row blocks, with ReLU
    # fused in afterwards (max(relu(a_i)) == max(max(a_i), 0) — exact).
    pool = jnp.maximum(
        jnp.maximum(acc[0 * rows_p:1 * rows_p], acc[1 * rows_p:2 * rows_p]),
        jnp.maximum(acc[2 * rows_p:3 * rows_p], acc[3 * rows_p:4 * rows_p]))
    pool = jnp.maximum(pool, 0.0)

    # BatchNorm2d(affine=False), training-mode stats: per-channel (lane) mean
    # and biased variance over all (b, ph, pw) rows. Padded channels stay 0.
    mean = jnp.mean(pool, axis=0, keepdims=True)
    var = jnp.mean((pool - mean) ** 2, axis=0, keepdims=True)
    inv_std = jax.lax.rsqrt(var + EPS)
    bn_ref[...] = (pool - mean) * inv_std

    # Export the stats so the wrapper can reconstruct pool1 without the kernel
    # storing the pool slab (saves ~9 vreg stores / 36 KB HBM writeback).
    stats_ref[0:1, :] = mean
    stats_ref[1:2, :] = inv_std


# --------------------------- Weight prep (hoisted, one-time) ------------------

def prepare_conv_weight(conv_w):
    """Pad/reshape the conv weight once; returns (w_conv_padded, static dims)."""
    conv_w = jnp.asarray(conv_w, jnp.float32)
    Cout, Cin, KH, KW = conv_w.shape
    K = Cin * KH * KW
    CP = ((Cout + LANE - 1) // LANE) * LANE       # 96  -> 128 (lane-dense)
    KP = ((K + LANE - 1) // LANE) * LANE          # 75  -> 128 (lane-dense)
    w = jnp.pad(conv_w.reshape(Cout, K).T, ((0, KP - K), (0, CP - Cout)))
    return w, (Cout, KH, KW)


# --------------------------- Wrapper ------------------------------------------

def net_forward(x, w_conv, fc_w, conv_dims):
    """Reproduces Net.forward. Returns dict with conv1/relu1/pool1/bn1/flat/fc2.

    x:         (B, 3, H, W)              NCHW float32
    w_conv:    (KP, CP)                  prepared conv weight (prepare_conv_weight)
    fc_w:      (NUM_CLASSES, 96*PH*PW)   Linear weight, bias=False (untouched)
    conv_dims: static (Cout, KH, KW)
    """
    Cout, KH, KW = conv_dims
    B, Cin, H, W = x.shape
    OH, OW = H - KH + 1, W - KW + 1
    assert OH % 2 == 0 and OW % 2 == 0, "2x2 max-pool expects even conv output"
    PH, PW = OH // 2, OW // 2
    npos = PH * PW
    K = Cin * KH * KW
    KP, CP = w_conv.shape

    f32 = jnp.float32
    x = x.astype(f32)
    fc_w = fc_w.astype(f32)

    # ---- im2col: rows ordered (dy, dx, ph, pw, b), cols (cin, kh, kw), K padded.
    patches = jnp.stack([x[:, :, kh:kh + OH, kw:kw + OW]
                         for kh in range(KH) for kw in range(KW)],
                        axis=2)                                   # (B,Cin,KH*KW,OH,OW)
    patches = patches.reshape(B, Cin, KH * KW, PH, 2, PW, 2)      # oh=2ph+dy, ow=2pw+dx
    patches = patches.transpose(4, 6, 3, 5, 0, 1, 2).reshape(4 * npos * B, K)
    patches = jnp.pad(patches, ((0, 0), (0, KP - K)))

    flops = 2 * (4 * npos * B) * KP * CP
    bytes_accessed = 4 * ((4 * npos * B) * KP + KP * CP                 # inputs
                          + (4 * npos * B) * CP + npos * B * CP + 2 * CP)  # outputs

    vmem = pl.BlockSpec(memory_space=pltpu.MemorySpace.VMEM)
    conv_mat, bn_mat, stats = pl.pallas_call(
        net_kernel,
        out_shape=(jax.ShapeDtypeStruct((4 * npos * B, CP), f32),   # conv slab
                   jax.ShapeDtypeStruct((npos * B, CP), f32),       # bn slab
                   jax.ShapeDtypeStruct((2, CP), f32)),             # [mean; inv_std]
        in_specs=[vmem, vmem],
        out_specs=(vmem, vmem, vmem),
        cost_estimate=pl.CostEstimate(flops=flops, transcendentals=2 * CP,
                                      bytes_accessed=bytes_accessed),
        compiler_params=pltpu.CompilerParams(vmem_limit_bytes=8 * 1024 * 1024),
    )(patches, w_conv)

    # ---- Un-pad + restore PyTorch NCHW layouts for the module's outputs.
    conv1 = (conv_mat[:, :Cout].reshape(2, 2, PH, PW, B, Cout)
             .transpose(4, 5, 2, 0, 3, 1).reshape(B, Cout, OH, OW))
    relu1 = jnp.maximum(conv1, 0.0)                 # recomputed (fuses with transpose)
    bn1 = bn_mat[:, :Cout].reshape(PH, PW, B, Cout).transpose(2, 3, 0, 1)
    mean = stats[0, :Cout].reshape(1, Cout, 1, 1)
    inv_std = stats[1, :Cout].reshape(1, Cout, 1, 1)
    pool1 = bn1 / inv_std + mean                    # exact inverse of the BN affine
    flat = bn1.reshape(B, Cout * PH * PW)           # PyTorch .view(-1, conv_output_size)
    # fc2 in the wrapper (XLA): ~184 KFLOPs, removed from the kernel per perf review.
    fc2 = jnp.dot(flat, fc_w.T, precision=MM_PRECISION)

    return {'conv1': conv1, 'relu1': relu1, 'pool1': pool1, 'bn1': bn1,
            'flat': flat, 'fc2': fc2}


# --------------------------- Pure-JAX reference (for validation) --------------

def net_reference(x, conv_w, fc_w):
    conv1 = jax.lax.conv_general_dilated(
        x, conv_w, window_strides=(1, 1), padding='VALID',
        dimension_numbers=('NCHW', 'OIHW', 'NCHW'),
        precision=jax.lax.Precision.HIGHEST)
    relu1 = jnp.maximum(conv1, 0.0)
    B, C, OH, OW = relu1.shape
    pool1 = relu1.reshape(B, C, OH // 2, 2, OW // 2, 2).max(axis=(3, 5))
    mean = pool1.mean(axis=(0, 2, 3), keepdims=True)
    var = ((pool1 - mean) ** 2).mean(axis=(0, 2, 3), keepdims=True)
    bn1 = (pool1 - mean) * jax.lax.rsqrt(var + EPS)
    flat = bn1.reshape(B, -1)
    fc2 = jnp.dot(flat, fc_w.T, precision=jax.lax.Precision.HIGHEST)
    return {'conv1': conv1, 'relu1': relu1, 'pool1': pool1, 'bn1': bn1,
            'flat': flat, 'fc2': fc2}


# --------------------------- Demo ----------------------------------------------

if __name__ == "__main__":
    key = jax.random.PRNGKey(0)
    k_x, k_conv, k_fc = jax.random.split(key, 3)

    # Small shapes consistent with the module: batch=2, input (3, 16, 16).
    B, Cin, H, W = 2, 3, 16, 16
    Cout, KH, KW = 96, 5, 5
    NUM_CLASSES = 10

    OH, OW = H - KH + 1, W - KW + 1           # 12, 12
    PH, PW = OH // 2, OW // 2                 # 6, 6
    conv_output_size = Cout * PH * PW         # 3456

    x = jax.random.normal(k_x, (B, Cin, H, W), jnp.float32)
    conv_w = jax.random.normal(k_conv, (Cout, Cin, KH, KW), jnp.float32) * (
        1.0 / (Cin * KH * KW) ** 0.5)
    fc_w = jax.random.normal(k_fc, (NUM_CLASSES, conv_output_size), jnp.float32) * (
        1.0 / conv_output_size ** 0.5)

    # One-time static weight preprocessing (hoisted out of the per-call path).
    w_conv_padded, conv_dims = prepare_conv_weight(conv_w)
    w_conv_padded = jax.block_until_ready(w_conv_padded)

    fwd = jax.jit(net_forward, static_argnames=('conv_dims',))
    out = fwd(x, w_conv_padded, fc_w, conv_dims=conv_dims)
    jax.tree_util.tree_map(jax.block_until_ready, out)

    # Shape checks mirroring the PyTorch module.
    assert out['conv1'].shape == (B, Cout, OH, OW)
    assert out['relu1'].shape == (B, Cout, OH, OW)
    assert out['pool1'].shape == (B, Cout, PH, PW)
    assert out['bn1'].shape == (B, Cout, PH, PW)
    assert out['flat'].shape == (B, conv_output_size)
    assert out['fc2'].shape == (B, NUM_CLASSES)

    # Numerical check against a pure-JAX/XLA reference of the same forward pass.
    ref = net_reference(x, conv_w, fc_w)
    for name in ('conv1', 'relu1', 'pool1', 'bn1', 'flat', 'fc2'):
        np.testing.assert_allclose(np.asarray(out[name]), np.asarray(ref[name]),
                                   rtol=2e-3, atol=2e-3)

    print("KERNEL_OK")
</pallas_src>

<mosaic_0001>
module attributes {stable_mosaic.version = 11 : i64} {
  func.func @net_kernel(%arg0: memref<288x128xf32, #tpu.memory_space<vmem>>, %arg1: memref<128x128xf32, #tpu.memory_space<vmem>>, %arg2: memref<288x128xf32, #tpu.memory_space<vmem>>, %arg3: memref<72x128xf32, #tpu.memory_space<vmem>>, %arg4: memref<2x128xf32, #tpu.memory_space<vmem>>) attributes {dimension_semantics = [], scalar_prefetch = 0 : i64, scratch_operands = 0 : i64, tpu.core_type = #tpu.core_type<tc>} {
    %c0 = arith.constant 0 : index
    %c0_0 = arith.constant 0 : index
    %0 = vector.load %arg0[%c0, %c0_0] : memref<288x128xf32, #tpu.memory_space<vmem>>, vector<288x128xf32>
    %c0_1 = arith.constant 0 : index
    %c0_2 = arith.constant 0 : index
    %1 = vector.load %arg1[%c0_1, %c0_2] : memref<128x128xf32, #tpu.memory_space<vmem>>, vector<128x128xf32>
    %cst = arith.constant dense<0.000000e+00> : vector<288x128xf32>
    %2 = tpu.matmul %0, %1, %cst {dimension_numbers = #tpu.dot_dimension_numbers<[1], [0], [0], [1], [0, 0, 1, 1], [], []>, precision = #tpu.contract_precision<fp32>} : vector<288x128xf32>, vector<128x128xf32>, vector<288x128xf32> -> vector<288x128xf32>
    %c0_3 = arith.constant 0 : index
    %c0_4 = arith.constant 0 : index
    %3 = vector.load %arg2[%c0_3, %c0_4] : memref<288x128xf32, #tpu.memory_space<vmem>>, vector<288x128xf32>
    tpu.vector_store %arg2[%c0_3, %c0_4], %2 {strides = array<i32>} : memref<288x128xf32, #tpu.memory_space<vmem>>, vector<288x128xf32>,
    %4 = vector.extract_strided_slice %2 {offsets = [0, 0], sizes = [72, 128], strides = [1, 1]} : vector<288x128xf32> to vector<72x128xf32>
    %5 = vector.extract_strided_slice %2 {offsets = [72, 0], sizes = [72, 128], strides = [1, 1]} : vector<288x128xf32> to vector<72x128xf32>
    %6 = arith.maximumf %4, %5 : vector<72x128xf32>
    %7 = vector.extract_strided_slice %2 {offsets = [144, 0], sizes = [72, 128], strides = [1, 1]} : vector<288x128xf32> to vector<72x128xf32>
    %8 = vector.extract_strided_slice %2 {offsets = [216, 0], sizes = [72, 128], strides = [1, 1]} : vector<288x128xf32> to vector<72x128xf32>
    %9 = arith.maximumf %7, %8 : vector<72x128xf32>
    %10 = arith.maximumf %6, %9 : vector<72x128xf32>
    %cst_5 = arith.constant 0.000000e+00 : f32
    %11 = vector.broadcast %cst_5 : f32 to vector<72x128xf32>
    %12 = arith.maximumf %10, %11 : vector<72x128xf32>
    %cst_6 = arith.constant dense<0.000000e+00> : vector<128xf32>
    %13 = vector.multi_reduction <add>, %12, %cst_6 [0] : vector<72x128xf32> to vector<128xf32>
    %14 = vector.shape_cast %13 : vector<128xf32> to vector<1x128xf32>
    %cst_7 = arith.constant 7.200000e+01 : f32
    %15 = vector.broadcast %cst_7 : f32 to vector<1x128xf32>
    %16 = arith.divf %14, %15 : vector<1x128xf32>
    %17 = vector.broadcast %16 : vector<1x128xf32> to vector<72x128xf32>
    %18 = arith.subf %12, %17 : vector<72x128xf32>
    %19 = arith.mulf %18, %18 : vector<72x128xf32>
    %cst_8 = arith.constant dense<0.000000e+00> : vector<128xf32>
    %20 = vector.multi_reduction <add>, %19, %cst_8 [0] : vector<72x128xf32> to vector<128xf32>
    %21 = vector.shape_cast %20 : vector<128xf32> to vector<1x128xf32>
    %cst_9 = arith.constant 7.200000e+01 : f32
    %22 = vector.broadcast %cst_9 : f32 to vector<1x128xf32>
    %23 = arith.divf %21, %22 : vector<1x128xf32>
    %cst_10 = arith.constant 9.99999974E-6 : f32
    %24 = vector.broadcast %cst_10 : f32 to vector<1x128xf32>
    %25 = arith.addf %23, %24 : vector<1x128xf32>
    %26 = math.rsqrt %25 : vector<1x128xf32>
    %27 = vector.broadcast %16 : vector<1x128xf32> to vector<72x128xf32>
    %28 = arith.subf %12, %27 : vector<72x128xf32>
    %29 = vector.broadcast %26 : vector<1x128xf32> to vector<72x128xf32>
    %30 = arith.mulf %28, %29 : vector<72x128xf32>
    %c0_11 = arith.constant 0 : index
    %c0_12 = arith.constant 0 : index
    %31 = vector.load %arg3[%c0_11, %c0_12] : memref<72x128xf32, #tpu.memory_space<vmem>>, vector<72x128xf32>
    tpu.vector_store %arg3[%c0_11, %c0_12], %30 {strides = array<i32>} : memref<72x128xf32, #tpu.memory_space<vmem>>, vector<72x128xf32>,
    %c0_13 = arith.constant 0 : index
    %c0_14 = arith.constant 0 : index
    %32 = vector.load %arg4[%c0_13, %c0_14] : memref<2x128xf32, #tpu.memory_space<vmem>>, vector<1x128xf32>
    tpu.vector_store %arg4[%c0_13, %c0_14], %16 {strides = array<i32>} : memref<2x128xf32, #tpu.memory_space<vmem>>, vector<1x128xf32>,
    %c1 = arith.constant 1 : index
    %c0_15 = arith.constant 0 : index
    %33 = vector.load %arg4[%c1, %c0_15] : memref<2x128xf32, #tpu.memory_space<vmem>>, vector<1x128xf32>
    tpu.vector_store %arg4[%c1, %c0_15], %26 {strides = array<i32>} : memref<2x128xf32, #tpu.memory_space<vmem>>, vector<1x128xf32>,
    return
  }
}

</mosaic_0001>

<llo_original>
// kernel: net_forward.1
$region0: #{net_forward.1}
  #allocation0 [shape = 'u32[]', space=smem, size = 0x4, offset = 0x4, fixed_abs, tag = 'smem constant byte address 0x4 - core index']
  #allocation1 [shape = 'u32[144,128]{1,0:T(1,128)}', space=vmem, size = 0x12000, scoped, tag = 'internal scratch']
  %s0 = inlined_call_operand.vmem [shape: f32[288,128], index: 0, kind: input, shape index: {}]
  %s1 = inlined_call_operand.vmem [shape: f32[128,128], index: 1, kind: input, shape index: {}]
  %s2 = inlined_call_operand.vmem [shape: f32[288,128], index: 2, kind: output, shape index: {0}]
  %s3 = inlined_call_operand.vmem [shape: f32[72,128], index: 3, kind: output, shape index: {1}]
  %s4 = inlined_call_operand.vmem [shape: f32[2,128], index: 4, kind: output, shape index: {2}]
  %5 = xla_tuple %s2, %s3, %s4
  %s6 = sld [smem:[#allocation0]]
  $region34: #{net_forward.1} parent=0
    _
  %s8 = ssub.s32 1, %s6
  %s9 = scalar_select 0, %s8, %s6
  // Predicated region
  $region2: #{net_forward.1} parent=0 // pred_check
    _
  $region3: #{net_forward.1} parent=0 // pred_check_branch
    %11 = sbr.rel (0) target = $region5
  $region4: #{net_forward.1} parent=0 // pred_region
    _
  $region5: #{net_forward.1} parent=0 // pred_fallthru
    _
  // Predicated region
  $region6: #{net_forward.1} parent=0 // pred_check
    _
  $region7: #{net_forward.1} parent=0 // pred_check_branch
    %13 = sbr.rel (0) target = $region9
  $region8: #{net_forward.1} parent=0 // pred_region
    _
  $region9: #{net_forward.1} parent=0 // pred_fallthru
    _
  %v14 = vld [vmem:[%s0] sm:$0xff]
  %v15 = vld [vmem:[%s0 + $0x8] sm:$0xff]
  %v16 = vld [vmem:[%s0 + $0x10] sm:$0xff]
  %v17 = vld [vmem:[%s0 + $0x18] sm:$0xff]
  %v18 = vld [vmem:[%s0 + $0x20] sm:$0xff]
  %v19 = vld [vmem:[%s0 + $0x28] sm:$0xff]
  %v20 = vld [vmem:[%s0 + $0x30] sm:$0xff]
  %v21 = vld [vmem:[%s0 + $0x38] sm:$0xff]
  %v22 = vld [vmem:[%s0 + $0x40] sm:$0xff]
  %v23 = vld [vmem:[%s0 + $0x48] sm:$0xff]
  %v24 = vld [vmem:[%s0 + $0x50] sm:$0xff]
  %v25 = vld [vmem:[%s0 + $0x58] sm:$0xff]
  %v26 = vld [vmem:[%s0 + $0x60] sm:$0xff]
  %v27 = vld [vmem:[%s0 + $0x68] sm:$0xff]
  %v28 = vld [vmem:[%s0 + $0x70] sm:$0xff]
  %v29 = vld [vmem:[%s0 + $0x78] sm:$0xff]
  %v30 = vld [vmem:[%s0 + $0x80] sm:$0xff]
  %v31 = vld [vmem:[%s0 + $0x88] sm:$0xff]
  %v32 = vld [vmem:[%s0 + $0x90] sm:$0xff]
  %v33 = vld [vmem:[%s0 + $0x98] sm:$0xff]
  %v34 = vld [vmem:[%s0 + $0xa0] sm:$0xff]
  %v35 = vld [vmem:[%s0 + $0xa8] sm:$0xff]
  %v36 = vld [vmem:[%s0 + $0xb0] sm:$0xff]
  %v37 = vld [vmem:[%s0 + $0xb8] sm:$0xff]
  %v38 = vld [vmem:[%s0 + $0xc0] sm:$0xff]
  %v39 = vld [vmem:[%s0 + $0xc8] sm:$0xff]
  %v40 = vld [vmem:[%s0 + $0xd0] sm:$0xff]
  %v41 = vld [vmem:[%s0 + $0xd8] sm:$0xff]
  %v42 = vld [vmem:[%s0 + $0xe0] sm:$0xff]
  %v43 = vld [vmem:[%s0 + $0xe8] sm:$0xff]
  %v44 = vld [vmem:[%s0 + $0xf0] sm:$0xff]
  %v45 = vld [vmem:[%s0 + $0xf8] sm:$0xff]
  %v46 = vld [vmem:[%s0 + $0x100] sm:$0xff]
  %v47 = vld [vmem:[%s0 + $0x108] sm:$0xff]
  %v48 = vld [vmem:[%s0 + $0x110] sm:$0xff]
  %v49 = vld [vmem:[%s0 + $0x118] sm:$0xff]
  %v50 = vld [vmem:[%s1] sm:$0xff]
  %v51 = vld [vmem:[%s1 + $0x8] sm:$0xff]
  %v52 = vld [vmem:[%s1 + $0x10] sm:$0xff]
  %v53 = vld [vmem:[%s1 + $0x18] sm:$0xff]
  %v54 = vld [vmem:[%s1 + $0x20] sm:$0xff]
  %v55 = vld [vmem:[%s1 + $0x28] sm:$0xff]
  %v56 = vld [vmem:[%s1 + $0x30] sm:$0xff]
  %v57 = vld [vmem:[%s1 + $0x38] sm:$0xff]
  %v58 = vld [vmem:[%s1 + $0x40] sm:$0xff]
  %v59 = vld [vmem:[%s1 + $0x48] sm:$0xff]
  %v60 = vld [vmem:[%s1 + $0x50] sm:$0xff]
  %v61 = vld [vmem:[%s1 + $0x58] sm:$0xff]
  %v62 = vld [vmem:[%s1 + $0x60] sm:$0xff]
  %v63 = vld [vmem:[%s1 + $0x68] sm:$0xff]
  %v64 = vld [vmem:[%s1 + $0x70] sm:$0xff]
  %v65 = vld [vmem:[%s1 + $0x78] sm:$0xff]
  %66 = vmatprep.subr.mxu0 0.0
  %v67 = vand.u32 %v50, 4294901760
  %68 = vmatpush1.msra.mxu0 %v67
  %69 = vmatprep.subr.mxu0 0.0
  %v70 = vand.u32 %v51, 4294901760
  %71 = vmatpush1.msra.mxu0 %v70
  %72 = vmatprep.subr.mxu0 0.0
  %v73 = vand.u32 %v52, 4294901760
  %74 = vmatpush1.msra.mxu0 %v73
  %75 = vmatprep.subr.mxu0 0.0
  %v76 = vand.u32 %v53, 4294901760
  %77 = vmatpush1.msra.mxu0 %v76
  %78 = vmatprep.subr.mxu0 0.0
  %v79 = vand.u32 %v54, 4294901760
  %80 = vmatpush1.msra.mxu0 %v79
  %81 = vmatprep.subr.mxu0 0.0
  %v82 = vand.u32 %v55, 4294901760
  %83 = vmatpush1.msra.mxu0 %v82
  %84 = vmatprep.subr.mxu0 0.0
  %v85 = vand.u32 %v56, 4294901760
  %86 = vmatpush1.msra.mxu0 %v85
  %87 = vmatprep.subr.mxu0 0.0
  %v88 = vand.u32 %v57, 4294901760
  %89 = vmatpush1.msra.mxu0 %v88
  %90 = vmatprep.subr.mxu0 0.0
  %v91 = vand.u32 %v58, 4294901760
  %92 = vmatpush1.msra.mxu0 %v91
  %93 = vmatprep.subr.mxu0 0.0
  %v94 = vand.u32 %v59, 4294901760
  %95 = vmatpush1.msra.mxu0 %v94
  %96 = vmatprep.subr.mxu0 0.0
  %v97 = vand.u32 %v60, 4294901760
  %98 = vmatpush1.msra.mxu0 %v97
  %99 = vmatprep.subr.mxu0 0.0
  %v100 = vand.u32 %v61, 4294901760
  %101 = vmatpush1.msra.mxu0 %v100
  %102 = vmatprep.subr.mxu0 0.0
  %v103 = vand.u32 %v62, 4294901760
  %104 = vmatpush1.msra.mxu0 %v103
  %105 = vmatprep.subr.mxu0 0.0
  %v106 = vand.u32 %v63, 4294901760
  %107 = vmatpush1.msra.mxu0 %v106
  %108 = vmatprep.subr.mxu0 0.0
  %v109 = vand.u32 %v64, 4294901760
  %110 = vmatpush1.msra.mxu0 %v109
  %111 = vmatprep.subr.mxu0 0.0
  %v112 = vand.u32 %v65, 4294901760
  %113 = vmatpush1.msra.mxu0 %v112
  %114 = vmatprep.subr.mxu0 0.0
  %115 = vmatpush1.msra.mxu0 0.0
  %116 = vmatprep.subr.mxu0 0.0
  %117 = vmatpush1.msra.mxu0 0.0
  %118 = vmatprep.subr.mxu0 0.0
  %119 = vmatpush1.msra.mxu0 0.0
  %120 = vmatprep.subr.mxu0 0.0
  %121 = vmatpush1.msra.mxu0 0.0
  %122 = vmatprep.subr.mxu0 0.0
  %123 = vmatpush1.msra.mxu0 0.0
  %124 = vmatprep.subr.mxu0 0.0
  %125 = vmatpush1.msra.mxu0 0.0
  %126 = vmatprep.subr.mxu0 0.0
  %127 = vmatpush1.msra.mxu0 0.0
  %128 = vmatprep.subr.mxu0 0.0
  %129 = vmatpush1.msra.mxu0 0.0
  %130 = vmatprep.subr.mxu0 0.0
  %131 = vmatpush1.msra.mxu0 0.0
  %132 = vmatprep.subr.mxu0 0.0
  %133 = vmatpush1.msra.mxu0 0.0
  %134 = vmatprep.subr.mxu0 0.0
  %135 = vmatpush1.msra.mxu0 0.0
  %136 = vmatprep.subr.mxu0 0.0
  %137 = vmatpush1.msra.mxu0 0.0
  %138 = vmatprep.subr.mxu0 0.0
  %139 = vmatpush1.msra.mxu0 0.0
  %140 = vmatprep.subr.mxu0 0.0
  %141 = vmatpush1.msra.mxu0 0.0
  %142 = vmatprep.subr.mxu0 0.0
  %143 = vmatpush1.msra.mxu0 0.0
  %144 = vmatprep.subr.mxu0 0.0
  %145 = vmatpush1.msra.mxu0 0.0
  %146 = vmatprep.mubr.f32.mxu0 0.0
  %v147 = vand.u32 %v14, 4294901760
  %v148 = vsub.f32 %v14, %v147
  %v149 = vand.u32 %v148, 4294901760
  %v150 = vsub.f32 %v148, %v149
  %v151 = vand.u32 %v150, 4294901760
  %152 = vmatmul.mubr.f32.gmra.mrb[0].mxu0 %v151
  %v153 = vpop.f32.mrb[0].mxu0
  %v154 = vadd.f32 0.0, %v153
  %v155 = vpop.f32.mrb[0].mxu0
  %156 = vmatprep.mubr.f32.mxu0 0.0
  %v157 = vand.u32 %v15, 4294901760
  %v158 = vsub.f32 %v15, %v157
  %v159 = vand.u32 %v158, 4294901760
  %v160 = vsub.f32 %v158, %v159
  %v161 = vand.u32 %v160, 4294901760
  %162 = vmatmul.mubr.f32.gmra.mrb[0].mxu0 %v161
  %v163 = vpop.f32.mrb[0].mxu0
  %v164 = vadd.f32 0.0, %v163
  %v165 = vpop.f32.mrb[0].mxu0
  %166 = vmatprep.mubr.f32.mxu0 0.0
  %v167 = vand.u32 %v16, 4294901760
  %v168 = vsub.f32 %v16, %v167
  %v169 = vand.u32 %v168, 4294901760
  %v170 = vsub.f32 %v168, %v169
  %v171 = vand.u32 %v170, 4294901760
  %172 = vmatmul.mubr.f32.gmra.mrb[0].mxu0 %v171
  %v173 = vpop.f32.mrb[0].mxu0
  %v174 = vadd.f32 0.0, %v173
  %v175 = vpop.f32.mrb[0].mxu0
  %176 = vmatprep.mubr.f32.mxu0 0.0
  %v177 = vand.u32 %v17, 4294901760
  %v178 = vsub.f32 %v17, %v177
  %v179 = vand.u32 %v178, 4294901760
  %v180 = vsub.f32 %v178, %v179
  %v181 = vand.u32 %v180, 4294901760
  %182 = vmatmul.mubr.f32.gmra.mrb[0].mxu0 %v181
  %v183 = vpop.f32.mrb[0].mxu0
  %v184 = vadd.f32 0.0, %v183
  %v185 = vpop.f32.mrb[0].mxu0
  %186 = vmatprep.mubr.f32.mxu0 0.0
  %v187 = vand.u32 %v18, 4294901760
  %v188 = vsub.f32 %v18, %v187
  %v189 = vand.u32 %v188, 4294901760
  %v190 = vsub.f32 %v188, %v189
  %v191 = vand.u32 %v190, 4294901760
  %192 = vmatmul.mubr.f32.gmra.mrb[0].mxu0 %v191
  %v193 = vpop.f32.mrb[0].mxu0
  %v194 = vadd.f32 0.0, %v193
  %v195 = vpop.f32.mrb[0].mxu0
  %196 = vmatprep.mubr.f32.mxu0 0.0
  %v197 = vand.u32 %v19, 4294901760
  %v198 = vsub.f32 %v19, %v197
  %v199 = vand.u32 %v198, 4294901760
  %v200 = vsub.f32 %v198, %v199
  %v201 = vand.u32 %v200, 4294901760
  %202 = vmatmul.mubr.f32.gmra.mrb[0].mxu0 %v201
  %v203 = vpop.f32.mrb[0].mxu0
  %v204 = vadd.f32 0.0, %v203
  %v205 = vpop.f32.mrb[0].mxu0
  %206 = vmatprep.mubr.f32.mxu0 0.0
  %v207 = vand.u32 %v20, 4294901760
  %v208 = vsub.f32 %v20, %v207
  %v209 = vand.u32 %v208, 4294901760
  %v210 = vsub.f32 %v208, %v209
  %v211 = vand.u32 %v210, 4294901760
  %212 = vmatmul.mubr.f32.gmra.mrb[0].mxu0 %v211
  %v213 = vpop.f32.mrb[0].mxu0
  %v214 = vadd.f32 0.0, %v213
  %v215 = vpop.f32.mrb[0].mxu0
  %216 = vmatprep.mubr.f32.mxu0 0.0
  %v217 = vand.u32 %v21, 4294901760
  %v218 = vsub.f32 %v21, %v217
  %v219 = vand.u32 %v218, 4294901760
  %v220 = vsub.f32 %v218, %v219
  %v221 = vand.u32 %v220, 4294901760
  %222 = vmatmul.mubr.f32.gmra.mrb[0].mxu0 %v221
  %v223 = vpop.f32.mrb[0].mxu0
  %v224 = vadd.f32 0.0, %v223
  %v225 = vpop.f32.mrb[0].mxu0
  %226 = vmatprep.mubr.f32.mxu0 0.0
  %v227 = vand.u32 %v22, 4294901760
  %v228 = vsub.f32 %v22, %v227
  %v229 = vand.u32 %v228, 4294901760
  %v230 = vsub.f32 %v228, %v229
  %v231 = vand.u32 %v230, 4294901760
  %232 = vmatmul.mubr.f32.gmra.mrb[0].mxu0 %v231
  %v233 = vpop.f32.mrb[0].mxu0
  %v234 = vadd.f32 0.0, %v233
  %v235 = vpop.f32.mrb[0].mxu0
  %236 = vmatprep.mubr.f32.mxu0 0.0
  %v237 = vand.u32 %v23, 4294901760
  %v238 = vsub.f32 %v23, %v237
  %v239 = vand.u32 %v238, 4294901760
  %v240 = vsub.f32 %v238, %v239
  %v241 = vand.u32 %v240, 4294901760
  %242 = vmatmul.mubr.f32.gmra.mrb[0].mxu0 %v241
  %v243 = vpop.f32.mrb[0].mxu0
  %v244 = vadd.f32 0.0, %v243
  %v245 = vpop.f32.mrb[0].mxu0
  %246 = vmatprep.mubr.f32.mxu0 0.0
  %v247 = vand.u32 %v24, 4294901760
  %v248 = vsub.f32 %v24, %v247
  %v249 = vand.u32 %v248, 4294901760
  %v250 = vsub.f32 %v248, %v249
  %v251 = vand.u32 %v250, 4294901760
  %252 = vmatmul.mubr.f32.gmra.mrb[0].mxu0 %v251
  %v253 = vpop.f32.mrb[0].mxu0
  %v254 = vadd.f32 0.0, %v253
  %v255 = vpop.f32.mrb[0].mxu0
  %256 = vmatprep.mubr.f32.mxu0 0.0
  %v257 = vand.u32 %v25, 4294901760
  %v258 = vsub.f32 %v25, %v257
  %v259 = vand.u32 %v258, 4294901760
  %v260 = vsub.f32 %v258, %v259
  %v261 = vand.u32 %v260, 4294901760
  %262 = vmatmul.mubr.f32.gmra.mrb[0].mxu0 %v261
  %v263 = vpop.f32.mrb[0].mxu0
  %v264 = vadd.f32 0.0, %v263
  %v265 = vpop.f32.mrb[0].mxu0
  %266 = vmatprep.mubr.f32.mxu0 0.0
  %v267 = vand.u32 %v26, 4294901760
  %v268 = vsub.f32 %v26, %v267
  %v269 = vand.u32 %v268, 4294901760
  %v270 = vsub.f32 %v268, %v269
  %v271 = vand.u32 %v270, 4294901760
  %272 = vmatmul.mubr.f32.gmra.mrb[0].mxu0 %v271
  %v273 = vpop.f32.mrb[0].mxu0
  %v274 = vadd.f32 0.0, %v273
  %v275 = vpop.f32.mrb[0].mxu0
  %276 = vmatprep.mubr.f32.mxu0 0.0
  %v277 = vand.u32 %v27, 4294901760
  %v278 = vsub.f32 %v27, %v277
  %v279 = vand.u32 %v278, 4294901760
  %v280 = vsub.f32 %v278, %v279
  %v281 = vand.u32 %v280, 4294901760
  %282 = vmatmul.mubr.f32.gmra.mrb[0].mxu0 %v281
  %v283 = vpop.f32.mrb[0].mxu0
  %v284 = vadd.f32 0.0, %v283
  %v285 = vpop.f32.mrb[0].mxu0
  %286 = vmatprep.mubr.f32.mxu0 0.0
  %v287 = vand.u32 %v28, 4294901760
  %v288 = vsub.f32 %v28, %v287
  %v289 = vand.u32 %v288, 4294901760
  %v290 = vsub.f32 %v288, %v289
  %v291 = vand.u32 %v290, 4294901760
  %292 = vmatmul.mubr.f32.gmra.mrb[0].mxu0 %v291
  %v293 = vpop.f32.mrb[0].mxu0
  %v294 = vadd.f32 0.0, %v293
  %v295 = vpop.f32.mrb[0].mxu0
  %296 = vmatprep.mubr.f32.mxu0 0.0
  %v297 = vand.u32 %v29, 4294901760
  %v298 = vsub.f32 %v29, %v297
  %v299 = vand.u32 %v298, 4294901760
  %v300 = vsub.f32 %v298, %v299
  %v301 = vand.u32 %v300, 4294901760
  %302 = vmatmul.mubr.f32.gmra.mrb[0].mxu0 %v301
  %v303 = vpop.f32.mrb[0].mxu0
  %v304 = vadd.f32 0.0, %v303
  %v305 = vpop.f32.mrb[0].mxu0
  %306 = vmatprep.mubr.f32.mxu0 0.0
  %v307 = vand.u32 %v30, 4294901760
  %v308 = vsub.f32 %v30, %v307
  %v309 = vand.u32 %v308, 4294901760
  %v310 = vsub.f32 %v308, %v309
  %v311 = vand.u32 %v310, 4294901760
  %312 = vmatmul.mubr.f32.gmra.mrb[0].mxu0 %v311
  %v313 = vpop.f32.mrb[0].mxu0
  %v314 = vadd.f32 0.0, %v313
  %v315 = vpop.f32.mrb[0].mxu0
  %316 = vmatprep.mubr.f32.mxu0 0.0
  %v317 = vand.u32 %v31, 4294901760
  %v318 = vsub.f32 %v31, %v317
  %v319 = vand.u32 %v318, 4294901760
  %v320 = vsub.f32 %v318, %v319
  %v321 = vand.u32 %v320, 4294901760
  %322 = vmatmul.mubr.f32.gmra.mrb[0].mxu0 %v321
  %v323 = vpop.f32.mrb[0].mxu0
  %v324 = vadd.f32 0.0, %v323
  %v325 = vpop.f32.mrb[0].mxu0
  %326 = vmatprep.mubr.f32.mxu0 0.0
  %v327 = vand.u32 %v32, 4294901760
  %v328 = vsub.f32 %v32, %v327
  %v329 = vand.u32 %v328, 4294901760
  %v330 = vsub.f32 %v328, %v329
  %v331 = vand.u32 %v330, 4294901760
  %332 = vmatmul.mubr.f32.gmra.mrb[0].mxu0 %v331
  %v333 = vpop.f32.mrb[0].mxu0
  %v334 = vadd.f32 0.0, %v333
  %v335 = vpop.f32.mrb[0].mxu0
  %336 = vmatprep.mubr.f32.mxu0 0.0
  %v337 = vand.u32 %v33, 4294901760
  %v338 = vsub.f32 %v33, %v337
  %v339 = vand.u32 %v338, 4294901760
  %v340 = vsub.f32 %v338, %v339
  %v341 = vand.u32 %v340, 4294901760
  %342 = vmatmul.mubr.f32.gmra.mrb[0].mxu0 %v341
  %v343 = vpop.f32.mrb[0].mxu0
  %v344 = vadd.f32 0.0, %v343
  %v345 = vpop.f32.mrb[0].mxu0
  %346 = vmatprep.mubr.f32.mxu0 0.0
  %v347 = vand.u32 %v34, 4294901760
  %v348 = vsub.f32 %v34, %v347
  %v349 = vand.u32 %v348, 4294901760
  %v350 = vsub.f32 %v348, %v349
  %v351 = vand.u32 %v350, 4294901760
  %352 = vmatmul.mubr.f32.gmra.mrb[0].mxu0 %v351
  %v353 = vpop.f32.mrb[0].mxu0
  %v354 = vadd.f32 0.0, %v353
  %v355 = vpop.f32.mrb[0].mxu0
  %356 = vmatprep.mubr.f32.mxu0 0.0
  %v357 = vand.u32 %v35, 4294901760
  %v358 = vsub.f32 %v35, %v357
  %v359 = vand.u32 %v358, 4294901760
  %v360 = vsub.f32 %v358, %v359
  %v361 = vand.u32 %v360, 4294901760
  %362 = vmatmul.mubr.f32.gmra.mrb[0].mxu0 %v361
  %v363 = vpop.f32.mrb[0].mxu0
  %v364 = vadd.f32 0.0, %v363
  %v365 = vpop.f32.mrb[0].mxu0
  %366 = vmatprep.mubr.f32.mxu0 0.0
  %v367 = vand.u32 %v36, 4294901760
  %v368 = vsub.f32 %v36, %v367
  %v369 = vand.u32 %v368, 4294901760
  %v370 = vsub.f32 %v368, %v369
  %v371 = vand.u32 %v370, 4294901760
  %372 = vmatmul.mubr.f32.gmra.mrb[0].mxu0 %v371
  %v373 = vpop.f32.mrb[0].mxu0
  %v374 = vadd.f32 0.0, %v373
  %v375 = vpop.f32.mrb[0].mxu0
  %376 = vmatprep.mubr.f32.mxu0 0.0
  %v377 = vand.u32 %v37, 4294901760
  %v378 = vsub.f32 %v37, %v377
  %v379 = vand.u32 %v378, 4294901760
  %v380 = vsub.f32 %v378, %v379
  %v381 = vand.u32 %v380, 4294901760
  %382 = vmatmul.mubr.f32.gmra.mrb[0].mxu0 %v381
  %v383 = vpop.f32.mrb[0].mxu0
  %v384 = vadd.f32 0.0, %v383
  %v385 = vpop.f32.mrb[0].mxu0
  %386 = vmatprep.mubr.f32.mxu0 0.0
  %v387 = vand.u32 %v38, 4294901760
  %v388 = vsub.f32 %v38, %v387
  %v389 = vand.u32 %v388, 4294901760
  %v390 = vsub.f32 %v388, %v389
  %v391 = vand.u32 %v390, 4294901760
  %392 = vmatmul.mubr.f32.gmra.mrb[0].mxu0 %v391
  %v393 = vpop.f32.mrb[0].mxu0
  %v394 = vadd.f32 0.0, %v393
  %v395 = vpop.f32.mrb[0].mxu0
  %396 = vmatprep.mubr.f32.mxu0 0.0
  %v397 = vand.u32 %v39, 4294901760
  %v398 = vsub.f32 %v39, %v397
  %v399 = vand.u32 %v398, 4294901760
  %v400 = vsub.f32 %v398, %v399
  %v401 = vand.u32 %v400, 4294901760
  %402 = vmatmul.mubr.f32.gmra.mrb[0].mxu0 %v401
  %v403 = vpop.f32.mrb[0].mxu0
  %v404 = vadd.f32 0.0, %v403
  %v405 = vpop.f32.mrb[0].mxu0
  %406 = vmatprep.mubr.f32.mxu0 0.0
  %v407 = vand.u32 %v40, 4294901760
  %v408 = vsub.f32 %v40, %v407
  %v409 = vand.u32 %v408, 4294901760
  %v410 = vsub.f32 %v408, %v409
  %v411 = vand.u32 %v410, 4294901760
  %412 = vmatmul.mubr.f32.gmra.mrb[0].mxu0 %v411
  %v413 = vpop.f32.mrb[0].mxu0
  %v414 = vadd.f32 0.0, %v413
  %v415 = vpop.f32.mrb[0].mxu0
  %416 = vmatprep.mubr.f32.mxu0 0.0
  %v417 = vand.u32 %v41, 4294901760
  %v418 = vsub.f32 %v41, %v417
  %v419 = vand.u32 %v418, 4294901760
  %v420 = vsub.f32 %v418, %v419
  %v421 = vand.u32 %v420, 4294901760
  %422 = vmatmul.mubr.f32.gmra.mrb[0].mxu0 %v421
  %v423 = vpop.f32.mrb[0].mxu0
  %v424 = vadd.f32 0.0, %v423
  %v425 = vpop.f32.mrb[0].mxu0
  %426 = vmatprep.mubr.f32.mxu0 0.0
  %v427 = vand.u32 %v42, 4294901760
  %v428 = vsub.f32 %v42, %v427
  %v429 = vand.u32 %v428, 4294901760
  %v430 = vsub.f32 %v428, %v429
  %v431 = vand.u32 %v430, 4294901760
  %432 = vmatmul.mubr.f32.gmra.mrb[0].mxu0 %v431
  %v433 = vpop.f32.mrb[0].mxu0
  %v434 = vadd.f32 0.0, %v433
  %v435 = vpop.f32.mrb[0].mxu0
  %436 = vmatprep.mubr.f32.mxu0 0.0
  %v437 = vand.u32 %v43, 4294901760
  %v438 = vsub.f32 %v43, %v437
  %v439 = vand.u32 %v438, 4294901760
  %v440 = vsub.f32 %v438, %v439
  %v441 = vand.u32 %v440, 4294901760
  %442 = vmatmul.mubr.f32.gmra.mrb[0].mxu0 %v441
  %v443 = vpop.f32.mrb[0].mxu0
  %v444 = vadd.f32 0.0, %v443
  %v445 = vpop.f32.mrb[0].mxu0
  %446 = vmatprep.mubr.f32.mxu0 0.0
  %v447 = vand.u32 %v44, 4294901760
  %v448 = vsub.f32 %v44, %v447
  %v449 = vand.u32 %v448, 4294901760
  %v450 = vsub.f32 %v448, %v449
  %v451 = vand.u32 %v450, 4294901760
  %452 = vmatmul.mubr.f32.gmra.mrb[0].mxu0 %v451
  %v453 = vpop.f32.mrb[0].mxu0
  %v454 = vadd.f32 0.0, %v453
  %v455 = vpop.f32.mrb[0].mxu0
  %456 = vmatprep.mubr.f32.mxu0 0.0
  %v457 = vand.u32 %v45, 4294901760
  %v458 = vsub.f32 %v45, %v457
  %v459 = vand.u32 %v458, 4294901760
  %v460 = vsub.f32 %v458, %v459
  %v461 = vand.u32 %v460, 4294901760
  %462 = vmatmul.mubr.f32.gmra.mrb[0].mxu0 %v461
  %v463 = vpop.f32.mrb[0].mxu0
  %v464 = vadd.f32 0.0, %v463
  %v465 = vpop.f32.mrb[0].mxu0
  %466 = vmatprep.mubr.f32.mxu0 0.0
  %v467 = vand.u32 %v46, 4294901760
  %v468 = vsub.f32 %v46, %v467
  %v469 = vand.u32 %v468, 4294901760
  %v470 = vsub.f32 %v468, %v469
  %v471 = vand.u32 %v470, 4294901760
  %472 = vmatmul.mubr.f32.gmra.mrb[0].mxu0 %v471
  %v473 = vpop.f32.mrb[0].mxu0
  %v474 = vadd.f32 0.0, %v473
  %v475 = vpop.f32.mrb[0].mxu0
  %476 = vmatprep.mubr.f32.mxu0 0.0
  %v477 = vand.u32 %v47, 4294901760
  %v478 = vsub.f32 %v47, %v477
  %v479 = vand.u32 %v478, 4294901760
  %v480 = vsub.f32 %v478, %v479
  %v481 = vand.u32 %v480, 4294901760
  %482 = vmatmul.mubr.f32.gmra.mrb[0].mxu0 %v481
  %v483 = vpop.f32.mrb[0].mxu0
  %v484 = vadd.f32 0.0, %v483
  %v485 = vpop.f32.mrb[0].mxu0
  %486 = vmatprep.mubr.f32.mxu0 0.0
  %v487 = vand.u32 %v48, 4294901760
  %v488 = vsub.f32 %v48, %v487
  %v489 = vand.u32 %v488, 4294901760
  %v490 = vsub.f32 %v488, %v489
  %v491 = vand.u32 %v490, 4294901760
  %492 = vmatmul.mubr.f32.gmra.mrb[0].mxu0 %v491
  %v493 = vpop.f32.mrb[0].mxu0
  %v494 = vadd.f32 0.0, %v493
  %v495 = vpop.f32.mrb[0].mxu0
  %496 = vmatprep.mubr.f32.mxu0 0.0
  %v497 = vand.u32 %v49, 4294901760
  %v498 = vsub.f32 %v49, %v497
  %v499 = vand.u32 %v498, 4294901760
  %v500 = vsub.f32 %v498, %v499
  %v501 = vand.u32 %v500, 4294901760
  %502 = vmatmul.mubr.f32.gmra.mrb[0].mxu0 %v501
  %v503 = vpop.f32.mrb[0].mxu0
  %v504 = vadd.f32 0.0, %v503
  %v505 = vpop.f32.mrb[0].mxu0
  %506 = vdwg.mxu0
  %507 = vmatprep.subr.mxu0 0.0
  %v508 = vand.u32 %v50, 4294901760
  %v509 = vsub.f32 %v50, %v508
  %v510 = vand.u32 %v509, 4294901760
  %v511 = vsub.f32 %v509, %v510
  %v512 = vand.u32 %v511, 4294901760
  %513 = vmatpush1.msra.mxu0 %v512
  %514 = vmatprep.subr.mxu0 0.0
  %v515 = vand.u32 %v51, 4294901760
  %v516 = vsub.f32 %v51, %v515
  %v517 = vand.u32 %v516, 4294901760
  %v518 = vsub.f32 %v516, %v517
  %v519 = vand.u32 %v518, 4294901760
  %520 = vmatpush1.msra.mxu0 %v519
  %521 = vmatprep.subr.mxu0 0.0
  %v522 = vand.u32 %v52, 4294901760
  %v523 = vsub.f32 %v52, %v522
  %v524 = vand.u32 %v523, 4294901760
  %v525 = vsub.f32 %v523, %v524
  %v526 = vand.u32 %v525, 4294901760
  %527 = vmatpush1.msra.mxu0 %v526
  %528 = vmatprep.subr.mxu0 0.0
  %v529 = vand.u32 %v53, 4294901760
  %v530 = vsub.f32 %v53, %v529
  %v531 = vand.u32 %v530, 4294901760
  %v532 = vsub.f32 %v530, %v531
  %v533 = vand.u32 %v532, 4294901760
  %534 = vmatpush1.msra.mxu0 %v533
  %535 = vmatprep.subr.mxu0 0.0
  %v536 = vand.u32 %v54, 4294901760
  %v537 = vsub.f32 %v54, %v536
  %v538 = vand.u32 %v537, 4294901760
  %v539 = vsub.f32 %v537, %v538
  %v540 = vand.u32 %v539, 4294901760
  %541 = vmatpush1.msra.mxu0 %v540
  %542 = vmatprep.subr.mxu0 0.0
  %v543 = vand.u32 %v55, 4294901760
  %v544 = vsub.f32 %v55, %v543
  %v545 = vand.u32 %v544, 4294901760
  %v546 = vsub.f32 %v544, %v545
  %v547 = vand.u32 %v546, 4294901760
  %548 = vmatpush1.msra.mxu0 %v547
  %549 = vmatprep.subr.mxu0 0.0
  %v550 = vand.u32 %v56, 4294901760
  %v551 = vsub.f32 %v56, %v550
  %v552 = vand.u32 %v551, 4294901760
  %v553 = vsub.f32 %v551, %v552
  %v554 = vand.u32 %v553, 4294901760
  %555 = vmatpush1.msra.mxu0 %v554
  %556 = vmatprep.subr.mxu0 0.0
  %v557 = vand.u32 %v57, 4294901760
  %v558 = vsub.f32 %v57, %v557
  %v559 = vand.u32 %v558, 4294901760
  %v560 = vsub.f32 %v558, %v559
  %v561 = vand.u32 %v560, 4294901760
  %562 = vmatpush1.msra.mxu0 %v561
  %563 = vmatprep.subr.mxu0 0.0
  %v564 = vand.u32 %v58, 4294901760
  %v565 = vsub.f32 %v58, %v564
  %v566 = vand.u32 %v565, 4294901760
  %v567 = vsub.f32 %v565, %v566
  %v568 = vand.u32 %v567, 4294901760
  %569 = vmatpush1.msra.mxu0 %v568
  %570 = vmatprep.subr.mxu0 0.0
  %v571 = vand.u32 %v59, 4294901760
  %v572 = vsub.f32 %v59, %v571
  %v573 = vand.u32 %v572, 4294901760
  %v574 = vsub.f32 %v572, %v573
  %v575 = vand.u32 %v574, 4294901760
  %576 = vmatpush1.msra.mxu0 %v575
  %577 = vmatprep.subr.mxu0 0.0
  %v578 = vand.u32 %v60, 4294901760
  %v579 = vsub.f32 %v60, %v578
  %v580 = vand.u32 %v579, 4294901760
  %v581 = vsub.f32 %v579, %v580
  %v582 = vand.u32 %v581, 4294901760
  %583 = vmatpush1.msra.mxu0 %v582
  %584 = vmatprep.subr.mxu0 0.0
  %v585 = vand.u32 %v61, 4294901760
  %v586 = vsub.f32 %v61, %v585
  %v587 = vand.u32 %v586, 4294901760
  %v588 = vsub.f32 %v586, %v587
  %v589 = vand.u32 %v588, 4294901760
  %590 = vmatpush1.msra.mxu0 %v589
  %591 = vmatprep.subr.mxu0 0.0
  %v592 = vand.u32 %v62, 4294901760
  %v593 = vsub.f32 %v62, %v592
  %v594 = vand.u32 %v593, 4294901760
  %v595 = vsub.f32 %v593, %v594
  %v596 = vand.u32 %v595, 4294901760
  %597 = vmatpush1.msra.mxu0 %v596
  %598 = vmatprep.subr.mxu0 0.0
  %v599 = vand.u32 %v63, 4294901760
  %v600 = vsub.f32 %v63, %v599
  %v601 = vand.u32 %v600, 4294901760
  %v602 = vsub.f32 %v600, %v601
  %v603 = vand.u32 %v602, 4294901760
  %604 = vmatpush1.msra.mxu0 %v603
  %605 = vmatprep.subr.mxu0 0.0
  %v606 = vand.u32 %v64, 4294901760
  %v607 = vsub.f32 %v64, %v606
  %v608 = vand.u32 %v607, 4294901760
  %v609 = vsub.f32 %v607, %v608
  %v610 = vand.u32 %v609, 4294901760
  %611 = vmatpush1.msra.mxu0 %v610
  %612 = vmatprep.subr.mxu0 0.0
  %v613 = vand.u32 %v65, 4294901760
  %v614 = vsub.f32 %v65, %v613
  %v615 = vand.u32 %v614, 4294901760
  %v616 = vsub.f32 %v614, %v615
  %v617 = vand.u32 %v616, 4294901760
  %618 = vmatpush1.msra.mxu0 %v617
  %619 = vmatprep.subr.mxu0 0.0
  %620 = vmatpush1.msra.mxu0 0.0
  %621 = vmatprep.subr.mxu0 0.0
  %622 = vmatpush1.msra.mxu0 0.0
  %623 = vmatprep.subr.mxu0 0.0
  %624 = vmatpush1.msra.mxu0 0.0
  %625 = vmatprep.subr.mxu0 0.0
  %626 = vmatpush1.msra.mxu0 0.0
  %627 = vmatprep.subr.mxu0 0.0
  %628 = vmatpush1.msra.mxu0 0.0
  %629 = vmatprep.subr.mxu0 0.0
  %630 = vmatpush1.msra.mxu0 0.0
  %631 = vmatprep.subr.mxu0 0.0
  %632 = vmatpush1.msra.mxu0 0.0
  %633 = vmatprep.subr.mxu0 0.0
  %634 = vmatpush1.msra.mxu0 0.0
  %635 = vmatprep.subr.mxu0 0.0
  %636 = vmatpush1.msra.mxu0 0.0
  %637 = vmatprep.subr.mxu0 0.0
  %638 = vmatpush1.msra.mxu0 0.0
  %639 = vmatprep.subr.mxu0 0.0
  %640 = vmatpush1.msra.mxu0 0.0
  %641 = vmatprep.subr.mxu0 0.0
  %642 = vmatpush1.msra.mxu0 0.0
  %643 = vmatprep.subr.mxu0 0.0
  %644 = vmatpush1.msra.mxu0 0.0
  %645 = vmatprep.subr.mxu0 0.0
  %646 = vmatpush1.msra.mxu0 0.0
  %647 = vmatprep.subr.mxu0 0.0
  %648 = vmatpush1.msra.mxu0 0.0
  %649 = vmatprep.subr.mxu0 0.0
  %650 = vmatpush1.msra.mxu0 0.0
  %651 = vmatprep.mubr.f32.mxu0 0.0
  %v652 = vand.u32 %v14, 4294901760
  %653 = vmatmul.mubr.f32.gmra.mrb[0].mxu0 %v652
  %v654 = vpop.f32.mrb[0].mxu0
  %v655 = vadd.f32 %v154, %v654
  %v656 = vpop.f32.mrb[0].mxu0
  %657 = vmatprep.mubr.f32.mxu0 0.0
  %v658 = vand.u32 %v15, 4294901760
  %659 = vmatmul.mubr.f32.gmra.mrb[0].mxu0 %v658
  %v660 = vpop.f32.mrb[0].mxu0
  %v661 = vadd.f32 %v164, %v660
  %v662 = vpop.f32.mrb[0].mxu0
  %663 = vmatprep.mubr.f32.mxu0 0.0
  %v664 = vand.u32 %v16, 4294901760
  %665 = vmatmul.mubr.f32.gmra.mrb[0].mxu0 %v664
  %v666 = vpop.f32.mrb[0].mxu0
  %v667 = vadd.f32 %v174, %v666
  %v668 = vpop.f32.mrb[0].mxu0
  %669 = vmatprep.mubr.f32.mxu0 0.0
  %v670 = vand.u32 %v17, 4294901760
  %671 = vmatmul.mubr.f32.gmra.mrb[0].mxu0 %v670
  %v672 = vpop.f32.mrb[0].mxu0
  %v673 = vadd.f32 %v184, %v672
  %v674 = vpop.f32.mrb[0].mxu0
  %675 = vmatprep.mubr.f32.mxu0 0.0
  %v676 = vand.u32 %v18, 4294901760
  %677 = vmatmul.mubr.f32.gmra.mrb[0].mxu0 %v676
  %v678 = vpop.f32.mrb[0].mxu0
  %v679 = vadd.f32 %v194, %v678
  %v680 = vpop.f32.mrb[0].mxu0
  %681 = vmatprep.mubr.f32.mxu0 0.0
  %v682 = vand.u32 %v19, 4294901760
  %683 = vmatmul.mubr.f32.gmra.mrb[0].mxu0 %v682
  %v684 = vpop.f32.mrb[0].mxu0
  %v685 = vadd.f32 %v204, %v684
  %v686 = vpop.f32.mrb[0].mxu0
  %687 = vmatprep.mubr.f32.mxu0 0.0
  %v688 = vand.u32 %v20, 4294901760
  %689 = vmatmul.mubr.f32.gmra.mrb[0].mxu0 %v688
  %v690 = vpop.f32.mrb[0].mxu0
  %v691 = vadd.f32 %v214, %v690
  %v692 = vpop.f32.mrb[0].mxu0
  %693 = vmatprep.mubr.f32.mxu0 0.0
  %v694 = vand.u32 %v21, 4294901760
  %695 = vmatmul.mubr.f32.gmra.mrb[0].mxu0 %v694
  %v696 = vpop.f32.mrb[0].mxu0
  %v697 = vadd.f32 %v224, %v696
  %v698 = vpop.f32.mrb[0].mxu0
  %699 = vmatprep.mubr.f32.mxu0 0.0
  %v700 = vand.u32 %v22, 4294901760
  %701 = vmatmul.mubr.f32.gmra.mrb[0].mxu0 %v700
  %v702 = vpop.f32.mrb[0].mxu0
  %v703 = vadd.f32 %v234, %v702
  %v704 = vpop.f32.mrb[0].mxu0
  %705 = vmatprep.mubr.f32.mxu0 0.0
  %v706 = vand.u32 %v23, 4294901760
  %707 = vmatmul.mubr.f32.gmra.mrb[0].mxu0 %v706
  %v708 = vpop.f32.mrb[0].mxu0
  %v709 = vadd.f32 %v244, %v708
  %v710 = vpop.f32.mrb[0].mxu0
  %711 = vmatprep.mubr.f32.mxu0 0.0
  %v712 = vand.u32 %v24, 4294901760
  %713 = vmatmul.mubr.f32.gmra.mrb[0].mxu0 %v712
  %v714 = vpop.f32.mrb[0].mxu0
  %v715 = vadd.f32 %v254, %v714
  %v716 = vpop.f32.mrb[0].mxu0
  %717 = vmatprep.mubr.f32.mxu0 0.0
  %v718 = vand.u32 %v25, 4294901760
  %719 = vmatmul.mubr.f32.gmra.mrb[0].mxu0 %v718
  %v720 = vpop.f32.mrb[0].mxu0
  %v721 = vadd.f32 %v264, %v720
  %v722 = vpop.f32.mrb[0].mxu0
  %723 = vmatprep.mubr.f32.mxu0 0.0
  %v724 = vand.u32 %v26, 4294901760
  %725 = vmatmul.mubr.f32.gmra.mrb[0].mxu0 %v724
  %v726 = vpop.f32.mrb[0].mxu0
  %v727 = vadd.f32 %v274, %v726
  %v728 = vpop.f32.mrb[0].mxu0
  %729 = vmatprep.mubr.f32.mxu0 0.0
  %v730 = vand.u32 %v27, 4294901760
  %731 = vmatmul.mubr.f32.gmra.mrb[0].mxu0 %v730
  %v732 = vpop.f32.mrb[0].mxu0
  %v733 = vadd.f32 %v284, %v732
  %v734 = vpop.f32.mrb[0].mxu0
  %735 = vmatprep.mubr.f32.mxu0 0.0
  %v736 = vand.u32 %v28, 4294901760
  %737 = vmatmul.mubr.f32.gmra.mrb[0].mxu0 %v736
  %v738 = vpop.f32.mrb[0].mxu0
  %v739 = vadd.f32 %v294, %v738
  %v740 = vpop.f32.mrb[0].mxu0
  %741 = vmatprep.mubr.f32.mxu0 0.0
  %v742 = vand.u32 %v29, 4294901760
  %743 = vmatmul.mubr.f32.gmra.mrb[0].mxu0 %v742
  %v744 = vpop.f32.mrb[0].mxu0
  %v745 = vadd.f32 %v304, %v744
  %v746 = vpop.f32.mrb[0].mxu0
  %747 = vmatprep.mubr.f32.mxu0 0.0
  %v748 = vand.u32 %v30, 4294901760
  %749 = vmatmul.mubr.f32.gmra.mrb[0].mxu0 %v748
  %v750 = vpop.f32.mrb[0].mxu0
  %v751 = vadd.f32 %v314, %v750
  %v752 = vpop.f32.mrb[0].mxu0
  %753 = vmatprep.mubr.f32.mxu0 0.0
  %v754 = vand.u32 %v31, 4294901760
  %755 = vmatmul.mubr.f32.gmra.mrb[0].mxu0 %v754
  %v756 = vpop.f32.mrb[0].mxu0
  %v757 = vadd.f32 %v324, %v756
  %v758 = vpop.f32.mrb[0].mxu0
  %759 = vmatprep.mubr.f32.mxu0 0.0
  %v760 = vand.u32 %v32, 4294901760
  %761 = vmatmul.mubr.f32.gmra.mrb[0].mxu0 %v760
  %v762 = vpop.f32.mrb[0].mxu0
  %v763 = vadd.f32 %v334, %v762
  %v764 = vpop.f32.mrb[0].mxu0
  %765 = vmatprep.mubr.f32.mxu0 0.0
  %v766 = vand.u32 %v33, 4294901760
  %767 = vmatmul.mubr.f32.gmra.mrb[0].mxu0 %v766
  %v768 = vpop.f32.mrb[0].mxu0
  %v769 = vadd.f32 %v344, %v768
  %v770 = vpop.f32.mrb[0].mxu0
  %771 = vmatprep.mubr.f32.mxu0 0.0
  %v772 = vand.u32 %v34, 4294901760
  %773 = vmatmul.mubr.f32.gmra.mrb[0].mxu0 %v772
  %v774 = vpop.f32.mrb[0].mxu0
  %v775 = vadd.f32 %v354, %v774
  %v776 = vpop.f32.mrb[0].mxu0
  %777 = vmatprep.mubr.f32.mxu0 0.0
  %v778 = vand.u32 %v35, 4294901760
  %779 = vmatmul.mubr.f32.gmra.mrb[0].mxu0 %v778
  %v780 = vpop.f32.mrb[0].mxu0
  %v781 = vadd.f32 %v364, %v780
  %v782 = vpop.f32.mrb[0].mxu0
  %783 = vmatprep.mubr.f32.mxu0 0.0
  %v784 = vand.u32 %v36, 4294901760
  %785 = vmatmul.mubr.f32.gmra.mrb[0].mxu0 %v784
  %v786 = vpop.f32.mrb[0].mxu0
  %v787 = vadd.f32 %v374, %v786
  %v788 = vpop.f32.mrb[0].mxu0
  %789 = vmatprep.mubr.f32.mxu0 0.0
  %v790 = vand.u32 %v37, 4294901760
  %791 = vmatmul.mubr.f32.gmra.mrb[0].mxu0 %v790
  %v792 = vpop.f32.mrb[0].mxu0
  %v793 = vadd.f32 %v384, %v792
  %v794 = vpop.f32.mrb[0].mxu0
  %795 = vmatprep.mubr.f32.mxu0 0.0
  %v796 = vand.u32 %v38, 4294901760
  %797 = vmatmul.mubr.f32.gmra.mrb[0].mxu0 %v796
  %v798 = vpop.f32.mrb[0].mxu0
  %v799 = vadd.f32 %v394, %v798
  %v800 = vpop.f32.mrb[0].mxu0
  %801 = vmatprep.mubr.f32.mxu0 0.0
  %v802 = vand.u32 %v39, 4294901760
  %803 = vmatmul.mubr.f32.gmra.mrb[0].mxu0 %v802
  %v804 = vpop.f32.mrb[0].mxu0
  %v805 = vadd.f32 %v404, %v804
  %v806 = vpop.f32.mrb[0].mxu0
  %807 = vmatprep.mubr.f32.mxu0 0.0
  %v808 = vand.u32 %v40, 4294901760
  %809 = vmatmul.mubr.f32.gmra.mrb[0].mxu0 %v808
  %v810 = vpop.f32.mrb[0].mxu0
  %v811 = vadd.f32 %v414, %v810
  %v812 = vpop.f32.mrb[0].mxu0
  %813 = vmatprep.mubr.f32.mxu0 0.0
  %v814 = vand.u32 %v41, 4294901760
  %815 = vmatmul.mubr.f32.gmra.mrb[0].mxu0 %v814
  %v816 = vpop.f32.mrb[0].mxu0
  %v817 = vadd.f32 %v424, %v816
  %v818 = vpop.f32.mrb[0].mxu0
  %819 = vmatprep.mubr.f32.mxu0 0.0
  %v820 = vand.u32 %v42, 4294901760
  %821 = vmatmul.mubr.f32.gmra.mrb[0].mxu0 %v820
  %v822 = vpop.f32.mrb[0].mxu0
  %v823 = vadd.f32 %v434, %v822
  %v824 = vpop.f32.mrb[0].mxu0
  %825 = vmatprep.mubr.f32.mxu0 0.0
  %v826 = vand.u32 %v43, 4294901760
  %827 = vmatmul.mubr.f32.gmra.mrb[0].mxu0 %v826
  %v828 = vpop.f32.mrb[0].mxu0
  %v829 = vadd.f32 %v444, %v828
  %v830 = vpop.f32.mrb[0].mxu0
  %831 = vmatprep.mubr.f32.mxu0 0.0
  %v832 = vand.u32 %v44, 4294901760
  %833 = vmatmul.mubr.f32.gmra.mrb[0].mxu0 %v832
  %v834 = vpop.f32.mrb[0].mxu0
  %v835 = vadd.f32 %v454, %v834
  %v836 = vpop.f32.mrb[0].mxu0
  %837 = vmatprep.mubr.f32.mxu0 0.0
  %v838 = vand.u32 %v45, 4294901760
  %839 = vmatmul.mubr.f32.gmra.mrb[0].mxu0 %v838
  %v840 = vpop.f32.mrb[0].mxu0
  %v841 = vadd.f32 %v464, %v840
  %v842 = vpop.f32.mrb[0].mxu0
  %843 = vmatprep.mubr.f32.mxu0 0.0
  %v844 = vand.u32 %v46, 4294901760
  %845 = vmatmul.mubr.f32.gmra.mrb[0].mxu0 %v844
  %v846 = vpop.f32.mrb[0].mxu0
  %v847 = vadd.f32 %v474, %v846
  %v848 = vpop.f32.mrb[0].mxu0
  %849 = vmatprep.mubr.f32.mxu0 0.0
  %v850 = vand.u32 %v47, 4294901760
  %851 = vmatmul.mubr.f32.gmra.mrb[0].mxu0 %v850
  %v852 = vpop.f32.mrb[0].mxu0
  %v853 = vadd.f32 %v484, %v852
  %v854 = vpop.f32.mrb[0].mxu0
  %855 = vmatprep.mubr.f32.mxu0 0.0
  %v856 = vand.u32 %v48, 4294901760
  %857 = vmatmul.mubr.f32.gmra.mrb[0].mxu0 %v856
  %v858 = vpop.f32.mrb[0].mxu0
  %v859 = vadd.f32 %v494, %v858
  %v860 = vpop.f32.mrb[0].mxu0
  %861 = vmatprep.mubr.f32.mxu0 0.0
  %v862 = vand.u32 %v49, 4294901760
  %863 = vmatmul.mubr.f32.gmra.mrb[0].mxu0 %v862
  %v864 = vpop.f32.mrb[0].mxu0
  %v865 = vadd.f32 %v504, %v864
  %v866 = vpop.f32.mrb[0].mxu0
  %867 = vdwg.mxu0
  %868 = vmatprep.subr.mxu0 0.0
  %v869 = vand.u32 %v50, 4294901760
  %v870 = vsub.f32 %v50, %v869
  %871 = vmatpush1.msra.mxu0 %v870
  %872 = vmatprep.subr.mxu0 0.0
  %v873 = vand.u32 %v51, 4294901760
  %v874 = vsub.f32 %v51, %v873
  %875 = vmatpush1.msra.mxu0 %v874
  %876 = vmatprep.subr.mxu0 0.0
  %v877 = vand.u32 %v52, 4294901760
  %v878 = vsub.f32 %v52, %v877
  %879 = vmatpush1.msra.mxu0 %v878
  %880 = vmatprep.subr.mxu0 0.0
  %v881 = vand.u32 %v53, 4294901760
  %v882 = vsub.f32 %v53, %v881
  %883 = vmatpush1.msra.mxu0 %v882
  %884 = vmatprep.subr.mxu0 0.0
  %v885 = vand.u32 %v54, 4294901760
  %v886 = vsub.f32 %v54, %v885
  %887 = vmatpush1.msra.mxu0 %v886
  %888 = vmatprep.subr.mxu0 0.0
  %v889 = vand.u32 %v55, 4294901760
  %v890 = vsub.f32 %v55, %v889
  %891 = vmatpush1.msra.mxu0 %v890
  %892 = vmatprep.subr.mxu0 0.0
  %v893 = vand.u32 %v56, 4294901760
  %v894 = vsub.f32 %v56, %v893
  %895 = vmatpush1.msra.mxu0 %v894
  %896 = vmatprep.subr.mxu0 0.0
  %v897 = vand.u32 %v57, 4294901760
  %v898 = vsub.f32 %v57, %v897
  %899 = vmatpush1.msra.mxu0 %v898
  %900 = vmatprep.subr.mxu0 0.0
  %v901 = vand.u32 %v58, 4294901760
  %v902 = vsub.f32 %v58, %v901
  %903 = vmatpush1.msra.mxu0 %v902
  %904 = vmatprep.subr.mxu0 0.0
  %v905 = vand.u32 %v59, 4294901760
  %v906 = vsub.f32 %v59, %v905
  %907 = vmatpush1.msra.mxu0 %v906
  %908 = vmatprep.subr.mxu0 0.0
  %v909 = vand.u32 %v60, 4294901760
  %v910 = vsub.f32 %v60, %v909
  %911 = vmatpush1.msra.mxu0 %v910
  %912 = vmatprep.subr.mxu0 0.0
  %v913 = vand.u32 %v61, 4294901760
  %v914 = vsub.f32 %v61, %v913
  %915 = vmatpush1.msra.mxu0 %v914
  %916 = vmatprep.subr.mxu0 0.0
  %v917 = vand.u32 %v62, 4294901760
  %v918 = vsub.f32 %v62, %v917
  %919 = vmatpush1.msra.mxu0 %v918
  %920 = vmatprep.subr.mxu0 0.0
  %v921 = vand.u32 %v63, 4294901760
  %v922 = vsub.f32 %v63, %v921
  %923 = vmatpush1.msra.mxu0 %v922
  %924 = vmatprep.subr.mxu0 0.0
  %v925 = vand.u32 %v64, 4294901760
  %v926 = vsub.f32 %v64, %v925
  %927 = vmatpush1.msra.mxu0 %v926
  %928 = vmatprep.subr.mxu0 0.0
  %v929 = vand.u32 %v65, 4294901760
  %v930 = vsub.f32 %v65, %v929
  %931 = vmatpush1.msra.mxu0 %v930
  %932 = vmatprep.subr.mxu0 0.0
  %933 = vmatpush1.msra.mxu0 0.0
  %934 = vmatprep.subr.mxu0 0.0
  %935 = vmatpush1.msra.mxu0 0.0
  %936 = vmatprep.subr.mxu0 0.0
  %937 = vmatpush1.msra.mxu0 0.0
  %938 = vmatprep.subr.mxu0 0.0
  %939 = vmatpush1.msra.mxu0 0.0
  %940 = vmatprep.subr.mxu0 0.0
  %941 = vmatpush1.msra.mxu0 0.0
  %942 = vmatprep.subr.mxu0 0.0
  %943 = vmatpush1.msra.mxu0 0.0
  %944 = vmatprep.subr.mxu0 0.0
  %945 = vmatpush1.msra.mxu0 0.0
  %946 = vmatprep.subr.mxu0 0.0
  %947 = vmatpush1.msra.mxu0 0.0
  %948 = vmatprep.subr.mxu0 0.0
  %949 = vmatpush1.msra.mxu0 0.0
  %950 = vmatprep.subr.mxu0 0.0
  %951 = vmatpush1.msra.mxu0 0.0
  %952 = vmatprep.subr.mxu0 0.0
  %953 = vmatpush1.msra.mxu0 0.0
  %954 = vmatprep.subr.mxu0 0.0
  %955 = vmatpush1.msra.mxu0 0.0
  %956 = vmatprep.subr.mxu0 0.0
  %957 = vmatpush1.msra.mxu0 0.0
  %958 = vmatprep.subr.mxu0 0.0
  %959 = vmatpush1.msra.mxu0 0.0
  %960 = vmatprep.subr.mxu0 0.0
  %961 = vmatpush1.msra.mxu0 0.0
  %962 = vmatprep.subr.mxu0 0.0
  %963 = vmatpush1.msra.mxu0 0.0
  %964 = vmatprep.mubr.f32.mxu0 0.0
  %v965 = vand.u32 %v14, 4294901760
  %v966 = vsub.f32 %v14, %v965
  %967 = vmatmul.mubr.f32.gmra.mrb[0].mxu0 %v966
  %v968 = vpop.f32.mrb[0].mxu0
  %v969 = vadd.f32 %v655, %v968
  %v970 = vpop.f32.mrb[0].mxu0
  %971 = vmatprep.mubr.f32.mxu0 0.0
  %v972 = vand.u32 %v15, 4294901760
  %v973 = vsub.f32 %v15, %v972
  %974 = vmatmul.mubr.f32.gmra.mrb[0].mxu0 %v973
  %v975 = vpop.f32.mrb[0].mxu0
  %v976 = vadd.f32 %v661, %v975
  %v977 = vpop.f32.mrb[0].mxu0
  %978 = vmatprep.mubr.f32.mxu0 0.0
  %v979 = vand.u32 %v16, 4294901760
  %v980 = vsub.f32 %v16, %v979
  %981 = vmatmul.mubr.f32.gmra.mrb[0].mxu0 %v980
  %v982 = vpop.f32.mrb[0].mxu0
  %v983 = vadd.f32 %v667, %v982
  %v984 = vpop.f32.mrb[0].mxu0
  %985 = vmatprep.mubr.f32.mxu0 0.0
  %v986 = vand.u32 %v17, 4294901760
  %v987 = vsub.f32 %v17, %v986
  %988 = vmatmul.mubr.f32.gmra.mrb[0].mxu0 %v987
  %v989 = vpop.f32.mrb[0].mxu0
  %v990 = vadd.f32 %v673, %v989
  %v991 = vpop.f32.mrb[0].mxu0
  %992 = vmatprep.mubr.f32.mxu0 0.0
  %v993 = vand.u32 %v18, 4294901760
  %v994 = vsub.f32 %v18, %v993
  %995 = vmatmul.mubr.f32.gmra.mrb[0].mxu0 %v994
  %v996 = vpop.f32.mrb[0].mxu0
  %v997 = vadd.f32 %v679, %v996
  %v998 = vpop.f32.mrb[0].mxu0
  %999 = vmatprep.mubr.f32.mxu0 0.0
  %v1000 = vand.u32 %v19, 4294901760
  %v1001 = vsub.f32 %v19, %v1000
  %1002 = vmatmul.mubr.f32.gmra.mrb[0].mxu0 %v1001
  %v1003 = vpop.f32.mrb[0].mxu0
  %v1004 = vadd.f32 %v685, %v1003
  %v1005 = vpop.f32.mrb[0].mxu0
  %1006 = vmatprep.mubr.f32.mxu0 0.0
  %v1007 = vand.u32 %v20, 4294901760
  %v1008 = vsub.f32 %v20, %v1007
  %1009 = vmatmul.mubr.f32.gmra.mrb[0].mxu0 %v1008
  %v1010 = vpop.f32.mrb[0].mxu0
  %v1011 = vadd.f32 %v691, %v1010
  %v1012 = vpop.f32.mrb[0].mxu0
  %1013 = vmatprep.mubr.f32.mxu0 0.0
  %v1014 = vand.u32 %v21, 4294901760
  %v1015 = vsub.f32 %v21, %v1014
  %1016 = vmatmul.mubr.f32.gmra.mrb[0].mxu0 %v1015
  %v1017 = vpop.f32.mrb[0].mxu0
  %v1018 = vadd.f32 %v697, %v1017
  %v1019 = vpop.f32.mrb[0].mxu0
  %1020 = vmatprep.mubr.f32.mxu0 0.0
  %v1021 = vand.u32 %v22, 4294901760
  %v1022 = vsub.f32 %v22, %v1021
  %1023 = vmatmul.mubr.f32.gmra.mrb[0].mxu0 %v1022
  %v1024 = vpop.f32.mrb[0].mxu0
  %v1025 = vadd.f32 %v703, %v1024
  %v1026 = vpop.f32.mrb[0].mxu0
  %1027 = vmatprep.mubr.f32.mxu0 0.0
  %v1028 = vand.u32 %v23, 4294901760
  %v1029 = vsub.f32 %v23, %v1028
  %1030 = vmatmul.mubr.f32.gmra.mrb[0].mxu0 %v1029
  %v1031 = vpop.f32.mrb[0].mxu0
  %v1032 = vadd.f32 %v709, %v1031
  %v1033 = vpop.f32.mrb[0].mxu0
  %1034 = vmatprep.mubr.f32.mxu0 0.0
  %v1035 = vand.u32 %v24, 4294901760
  %v1036 = vsub.f32 %v24, %v1035
  %1037 = vmatmul.mubr.f32.gmra.mrb[0].mxu0 %v1036
  %v1038 = vpop.f32.mrb[0].mxu0
  %v1039 = vadd.f32 %v715, %v1038
  %v1040 = vpop.f32.mrb[0].mxu0
  %1041 = vmatprep.mubr.f32.mxu0 0.0
  %v1042 = vand.u32 %v25, 4294901760
  %v1043 = vsub.f32 %v25, %v1042
  %1044 = vmatmul.mubr.f32.gmra.mrb[0].mxu0 %v1043
  %v1045 = vpop.f32.mrb[0].mxu0
  %v1046 = vadd.f32 %v721, %v1045
  %v1047 = vpop.f32.mrb[0].mxu0
  %1048 = vmatprep.mubr.f32.mxu0 0.0
  %v1049 = vand.u32 %v26, 4294901760
  %v1050 = vsub.f32 %v26, %v1049
  %1051 = vmatmul.mubr.f32.gmra.mrb[0].mxu0 %v1050
  %v1052 = vpop.f32.mrb[0].mxu0
  %v1053 = vadd.f32 %v727, %v1052
  %v1054 = vpop.f32.mrb[0].mxu0
  %1055 = vmatprep.mubr.f32.mxu0 0.0
  %v1056 = vand.u32 %v27, 4294901760
  %v1057 = vsub.f32 %v27, %v1056
  %1058 = vmatmul.mubr.f32.gmra.mrb[0].mxu0 %v1057
  %v1059 = vpop.f32.mrb[0].mxu0
  %v1060 = vadd.f32 %v733, %v1059
  %v1061 = vpop.f32.mrb[0].mxu0
  %1062 = vmatprep.mubr.f32.mxu0 0.0
  %v1063 = vand.u32 %v28, 4294901760
  %v1064 = vsub.f32 %v28, %v1063
  %1065 = vmatmul.mubr.f32.gmra.mrb[0].mxu0 %v1064
  %v1066 = vpop.f32.mrb[0].mxu0
  %v1067 = vadd.f32 %v739, %v1066
  %v1068 = vpop.f32.mrb[0].mxu0
  %1069 = vmatprep.mubr.f32.mxu0 0.0
  %v1070 = vand.u32 %v29, 4294901760
  %v1071 = vsub.f32 %v29, %v1070
  %1072 = vmatmul.mubr.f32.gmra.mrb[0].mxu0 %v1071
  %v1073 = vpop.f32.mrb[0].mxu0
  %v1074 = vadd.f32 %v745, %v1073
  %v1075 = vpop.f32.mrb[0].mxu0
  %1076 = vmatprep.mubr.f32.mxu0 0.0
  %v1077 = vand.u32 %v30, 4294901760
  %v1078 = vsub.f32 %v30, %v1077
  %1079 = vmatmul.mubr.f32.gmra.mrb[0].mxu0 %v1078
  %v1080 = vpop.f32.mrb[0].mxu0
  %v1081 = vadd.f32 %v751, %v1080
  %v1082 = vpop.f32.mrb[0].mxu0
  %1083 = vmatprep.mubr.f32.mxu0 0.0
  %v1084 = vand.u32 %v31, 4294901760
  %v1085 = vsub.f32 %v31, %v1084
  %1086 = vmatmul.mubr.f32.gmra.mrb[0].mxu0 %v1085
  %v1087 = vpop.f32.mrb[0].mxu0
  %v1088 = vadd.f32 %v757, %v1087
  %v1089 = vpop.f32.mrb[0].mxu0
  %1090 = vmatprep.mubr.f32.mxu0 0.0
  %v1091 = vand.u32 %v32, 4294901760
  %v1092 = vsub.f32 %v32, %v1091
  %1093 = vmatmul.mubr.f32.gmra.mrb[0].mxu0 %v1092
  %v1094 = vpop.f32.mrb[0].mxu0
  %v1095 = vadd.f32 %v763, %v1094
  %v1096 = vpop.f32.mrb[0].mxu0
  %1097 = vmatprep.mubr.f32.mxu0 0.0
  %v1098 = vand.u32 %v33, 4294901760
  %v1099 = vsub.f32 %v33, %v1098
  %1100 = vmatmul.mubr.f32.gmra.mrb[0].mxu0 %v1099
  %v1101 = vpop.f32.mrb[0].mxu0
  %v1102 = vadd.f32 %v769, %v1101
  %v1103 = vpop.f32.mrb[0].mxu0
  %1104 = vmatprep.mubr.f32.mxu0 0.0
  %v1105 = vand.u32 %v34, 4294901760
  %v1106 = vsub.f32 %v34, %v1105
  %1107 = vmatmul.mubr.f32.gmra.mrb[0].mxu0 %v1106
  %v1108 = vpop.f32.mrb[0].mxu0
  %v1109 = vadd.f32 %v775, %v1108
  %v1110 = vpop.f32.mrb[0].mxu0
  %1111 = vmatprep.mubr.f32.mxu0 0.0
  %v1112 = vand.u32 %v35, 4294901760
  %v1113 = vsub.f32 %v35, %v1112
  %1114 = vmatmul.mubr.f32.gmra.mrb[0].mxu0 %v1113
  %v1115 = vpop.f32.mrb[0].mxu0
  %v1116 = vadd.f32 %v781, %v1115
  %v1117 = vpop.f32.mrb[0].mxu0
  %1118 = vmatprep.mubr.f32.mxu0 0.0
  %v1119 = vand.u32 %v36, 4294901760
  %v1120 = vsub.f32 %v36, %v1119
  %1121 = vmatmul.mubr.f32.gmra.mrb[0].mxu0 %v1120
  %v1122 = vpop.f32.mrb[0].mxu0
  %v1123 = vadd.f32 %v787, %v1122
  %v1124 = vpop.f32.mrb[0].mxu0
  %1125 = vmatprep.mubr.f32.mxu0 0.0
  %v1126 = vand.u32 %v37, 4294901760
  %v1127 = vsub.f32 %v37, %v1126
  %1128 = vmatmul.mubr.f32.gmra.mrb[0].mxu0 %v1127
  %v1129 = vpop.f32.mrb[0].mxu0
  %v1130 = vadd.f32 %v793, %v1129
  %v1131 = vpop.f32.mrb[0].mxu0
  %1132 = vmatprep.mubr.f32.mxu0 0.0
  %v1133 = vand.u32 %v38, 4294901760
  %v1134 = vsub.f32 %v38, %v1133
  %1135 = vmatmul.mubr.f32.gmra.mrb[0].mxu0 %v1134
  %v1136 = vpop.f32.mrb[0].mxu0
  %v1137 = vadd.f32 %v799, %v1136
  %v1138 = vpop.f32.mrb[0].mxu0
  %1139 = vmatprep.mubr.f32.mxu0 0.0
  %v1140 = vand.u32 %v39, 4294901760
  %v1141 = vsub.f32 %v39, %v1140
  %1142 = vmatmul.mubr.f32.gmra.mrb[0].mxu0 %v1141
  %v1143 = vpop.f32.mrb[0].mxu0
  %v1144 = vadd.f32 %v805, %v1143
  %v1145 = vpop.f32.mrb[0].mxu0
  %1146 = vmatprep.mubr.f32.mxu0 0.0
  %v1147 = vand.u32 %v40, 4294901760
  %v1148 = vsub.f32 %v40, %v1147
  %1149 = vmatmul.mubr.f32.gmra.mrb[0].mxu0 %v1148
  %v1150 = vpop.f32.mrb[0].mxu0
  %v1151 = vadd.f32 %v811, %v1150
  %v1152 = vpop.f32.mrb[0].mxu0
  %1153 = vmatprep.mubr.f32.mxu0 0.0
  %v1154 = vand.u32 %v41, 4294901760
  %v1155 = vsub.f32 %v41, %v1154
  %1156 = vmatmul.mubr.f32.gmra.mrb[0].mxu0 %v1155
  %v1157 = vpop.f32.mrb[0].mxu0
  %v1158 = vadd.f32 %v817, %v1157
  %v1159 = vpop.f32.mrb[0].mxu0
  %1160 = vmatprep.mubr.f32.mxu0 0.0
  %v1161 = vand.u32 %v42, 4294901760
  %v1162 = vsub.f32 %v42, %v1161
  %1163 = vmatmul.mubr.f32.gmra.mrb[0].mxu0 %v1162
  %v1164 = vpop.f32.mrb[0].mxu0
  %v1165 = vadd.f32 %v823, %v1164
  %v1166 = vpop.f32.mrb[0].mxu0
  %1167 = vmatprep.mubr.f32.mxu0 0.0
  %v1168 = vand.u32 %v43, 4294901760
  %v1169 = vsub.f32 %v43, %v1168
  %1170 = vmatmul.mubr.f32.gmra.mrb[0].mxu0 %v1169
  %v1171 = vpop.f32.mrb[0].mxu0
  %v1172 = vadd.f32 %v829, %v1171
  %v1173 = vpop.f32.mrb[0].mxu0
  %1174 = vmatprep.mubr.f32.mxu0 0.0
  %v1175 = vand.u32 %v44, 4294901760
  %v1176 = vsub.f32 %v44, %v1175
  %1177 = vmatmul.mubr.f32.gmra.mrb[0].mxu0 %v1176
  %v1178 = vpop.f32.mrb[0].mxu0
  %v1179 = vadd.f32 %v835, %v1178
  %v1180 = vpop.f32.mrb[0].mxu0
  %1181 = vmatprep.mubr.f32.mxu0 0.0
  %v1182 = vand.u32 %v45, 4294901760
  %v1183 = vsub.f32 %v45, %v1182
  %1184 = vmatmul.mubr.f32.gmra.mrb[0].mxu0 %v1183
  %v1185 = vpop.f32.mrb[0].mxu0
  %v1186 = vadd.f32 %v841, %v1185
  %v1187 = vpop.f32.mrb[0].mxu0
  %1188 = vmatprep.mubr.f32.mxu0 0.0
  %v1189 = vand.u32 %v46, 4294901760
  %v1190 = vsub.f32 %v46, %v1189
  %1191 = vmatmul.mubr.f32.gmra.mrb[0].mxu0 %v1190
  %v1192 = vpop.f32.mrb[0].mxu0
  %v1193 = vadd.f32 %v847, %v1192
  %v1194 = vpop.f32.mrb[0].mxu0
  %1195 = vmatprep.mubr.f32.mxu0 0.0
  %v1196 = vand.u32 %v47, 4294901760
  %v1197 = vsub.f32 %v47, %v1196
  %1198 = vmatmul.mubr.f32.gmra.mrb[0].mxu0 %v1197
  %v1199 = vpop.f32.mrb[0].mxu0
  %v1200 = vadd.f32 %v853, %v1199
  %v1201 = vpop.f32.mrb[0].mxu0
  %1202 = vmatprep.mubr.f32.mxu0 0.0
  %v1203 = vand.u32 %v48, 4294901760
  %v1204 = vsub.f32 %v48, %v1203
  %1205 = vmatmul.mubr.f32.gmra.mrb[0].mxu0 %v1204
  %v1206 = vpop.f32.mrb[0].mxu0
  %v1207 = vadd.f32 %v859, %v1206
  %v1208 = vpop.f32.mrb[0].mxu0
  %1209 = vmatprep.mubr.f32.mxu0 0.0
  %v1210 = vand.u32 %v49, 4294901760
  %v1211 = vsub.f32 %v49, %v1210
  %1212 = vmatmul.mubr.f32.gmra.mrb[0].mxu0 %v1211
  %v1213 = vpop.f32.mrb[0].mxu0
  %v1214 = vadd.f32 %v865, %v1213
  %v1215 = vpop.f32.mrb[0].mxu0
  %1216 = vdwg.mxu0
  %1217 = vmatprep.subr.mxu0 0.0
  %v1218 = vand.u32 %v50, 4294901760
  %1219 = vmatpush1.msra.mxu0 %v1218
  %1220 = vmatprep.subr.mxu0 0.0
  %v1221 = vand.u32 %v51, 4294901760
  %1222 = vmatpush1.msra.mxu0 %v1221
  %1223 = vmatprep.subr.mxu0 0.0
  %v1224 = vand.u32 %v52, 4294901760
  %1225 = vmatpush1.msra.mxu0 %v1224
  %1226 = vmatprep.subr.mxu0 0.0
  %v1227 = vand.u32 %v53, 4294901760
  %1228 = vmatpush1.msra.mxu0 %v1227
  %1229 = vmatprep.subr.mxu0 0.0
  %v1230 = vand.u32 %v54, 4294901760
  %1231 = vmatpush1.msra.mxu0 %v1230
  %1232 = vmatprep.subr.mxu0 0.0
  %v1233 = vand.u32 %v55, 4294901760
  %1234 = vmatpush1.msra.mxu0 %v1233
  %1235 = vmatprep.subr.mxu0 0.0
  %v1236 = vand.u32 %v56, 4294901760
  %1237 = vmatpush1.msra.mxu0 %v1236
  %1238 = vmatprep.subr.mxu0 0.0
  %v1239 = vand.u32 %v57, 4294901760
  %1240 = vmatpush1.msra.mxu0 %v1239
  %1241 = vmatprep.subr.mxu0 0.0
  %v1242 = vand.u32 %v58, 4294901760
  %1243 = vmatpush1.msra.mxu0 %v1242
  %1244 = vmatprep.subr.mxu0 0.0
  %v1245 = vand.u32 %v59, 4294901760
  %1246 = vmatpush1.msra.mxu0 %v1245
  %1247 = vmatprep.subr.mxu0 0.0
  %v1248 = vand.u32 %v60, 4294901760
  %1249 = vmatpush1.msra.mxu0 %v1248
  %1250 = vmatprep.subr.mxu0 0.0
  %v1251 = vand.u32 %v61, 4294901760
  %1252 = vmatpush1.msra.mxu0 %v1251
  %1253 = vmatprep.subr.mxu0 0.0
  %v1254 = vand.u32 %v62, 4294901760
  %1255 = vmatpush1.msra.mxu0 %v1254
  %1256 = vmatprep.subr.mxu0 0.0
  %v1257 = vand.u32 %v63, 4294901760
  %1258 = vmatpush1.msra.mxu0 %v1257
  %1259 = vmatprep.subr.mxu0 0.0
  %v1260 = vand.u32 %v64, 4294901760
  %1261 = vmatpush1.msra.mxu0 %v1260
  %1262 = vmatprep.subr.mxu0 0.0
  %v1263 = vand.u32 %v65, 4294901760
  %1264 = vmatpush1.msra.mxu0 %v1263
  %1265 = vmatprep.subr.mxu0 0.0
  %1266 = vmatpush1.msra.mxu0 0.0
  %1267 = vmatprep.subr.mxu0 0.0
  %1268 = vmatpush1.msra.mxu0 0.0
  %1269 = vmatprep.subr.mxu0 0.0
  %1270 = vmatpush1.msra.mxu0 0.0
  %1271 = vmatprep.subr.mxu0 0.0
  %1272 = vmatpush1.msra.mxu0 0.0
  %1273 = vmatprep.subr.mxu0 0.0
  %1274 = vmatpush1.msra.mxu0 0.0
  %1275 = vmatprep.subr.mxu0 0.0
  %1276 = vmatpush1.msra.mxu0 0.0
  %1277 = vmatprep.subr.mxu0 0.0
  %1278 = vmatpush1.msra.mxu0 0.0
  %1279 = vmatprep.subr.mxu0 0.0
  %1280 = vmatpush1.msra.mxu0 0.0
  %1281 = vmatprep.subr.mxu0 0.0
  %1282 = vmatpush1.msra.mxu0 0.0
  %1283 = vmatprep.subr.mxu0 0.0
  %1284 = vmatpush1.msra.mxu0 0.0
  %1285 = vmatprep.subr.mxu0 0.0
  %1286 = vmatpush1.msra.mxu0 0.0
  %1287 = vmatprep.subr.mxu0 0.0
  %1288 = vmatpush1.msra.mxu0 0.0
  %1289 = vmatprep.subr.mxu0 0.0
  %1290 = vmatpush1.msra.mxu0 0.0
  %1291 = vmatprep.subr.mxu0 0.0
  %1292 = vmatpush1.msra.mxu0 0.0
  %1293 = vmatprep.subr.mxu0 0.0
  %1294 = vmatpush1.msra.mxu0 0.0
  %1295 = vmatprep.subr.mxu0 0.0
  %1296 = vmatpush1.msra.mxu0 0.0
  %1297 = vmatprep.mubr.f32.mxu0 0.0
  %v1298 = vand.u32 %v14, 4294901760
  %v1299 = vsub.f32 %v14, %v1298
  %v1300 = vand.u32 %v1299, 4294901760
  %1301 = vmatmul.mubr.f32.gmra.mrb[0].mxu0 %v1300
  %v1302 = vpop.f32.mrb[0].mxu0
  %v1303 = vadd.f32 %v969, %v1302
  %v1304 = vpop.f32.mrb[0].mxu0
  %1305 = vmatprep.mubr.f32.mxu0 0.0
  %v1306 = vand.u32 %v15, 4294901760
  %v1307 = vsub.f32 %v15, %v1306
  %v1308 = vand.u32 %v1307, 4294901760
  %1309 = vmatmul.mubr.f32.gmra.mrb[0].mxu0 %v1308
  %v1310 = vpop.f32.mrb[0].mxu0
  %v1311 = vadd.f32 %v976, %v1310
  %v1312 = vpop.f32.mrb[0].mxu0
  %1313 = vmatprep.mubr.f32.mxu0 0.0
  %v1314 = vand.u32 %v16, 4294901760
  %v1315 = vsub.f32 %v16, %v1314
  %v1316 = vand.u32 %v1315, 4294901760
  %1317 = vmatmul.mubr.f32.gmra.mrb[0].mxu0 %v1316
  %v1318 = vpop.f32.mrb[0].mxu0
  %v1319 = vadd.f32 %v983, %v1318
  %v1320 = vpop.f32.mrb[0].mxu0
  %1321 = vmatprep.mubr.f32.mxu0 0.0
  %v1322 = vand.u32 %v17, 4294901760
  %v1323 = vsub.f32 %v17, %v1322
  %v1324 = vand.u32 %v1323, 4294901760
  %1325 = vmatmul.mubr.f32.gmra.mrb[0].mxu0 %v1324
  %v1326 = vpop.f32.mrb[0].mxu0
  %v1327 = vadd.f32 %v990, %v1326
  %v1328 = vpop.f32.mrb[0].mxu0
  %1329 = vmatprep.mubr.f32.mxu0 0.0
  %v1330 = vand.u32 %v18, 4294901760
  %v1331 = vsub.f32 %v18, %v1330
  %v1332 = vand.u32 %v1331, 4294901760
  %1333 = vmatmul.mubr.f32.gmra.mrb[0].mxu0 %v1332
  %v1334 = vpop.f32.mrb[0].mxu0
  %v1335 = vadd.f32 %v997, %v1334
  %v1336 = vpop.f32.mrb[0].mxu0
  %1337 = vmatprep.mubr.f32.mxu0 0.0
  %v1338 = vand.u32 %v19, 4294901760
  %v1339 = vsub.f32 %v19, %v1338
  %v1340 = vand.u32 %v1339, 4294901760
  %1341 = vmatmul.mubr.f32.gmra.mrb[0].mxu0 %v1340
  %v1342 = vpop.f32.mrb[0].mxu0
  %v1343 = vadd.f32 %v1004, %v1342
  %v1344 = vpop.f32.mrb[0].mxu0
  %1345 = vmatprep.mubr.f32.mxu0 0.0
  %v1346 = vand.u32 %v20, 4294901760
  %v1347 = vsub.f32 %v20, %v1346
  %v1348 = vand.u32 %v1347, 4294901760
  %1349 = vmatmul.mubr.f32.gmra.mrb[0].mxu0 %v1348
  %v1350 = vpop.f32.mrb[0].mxu0
  %v1351 = vadd.f32 %v1011, %v1350
  %v1352 = vpop.f32.mrb[0].mxu0
  %1353 = vmatprep.mubr.f32.mxu0 0.0
  %v1354 = vand.u32 %v21, 4294901760
  %v1355 = vsub.f32 %v21, %v1354
  %v1356 = vand.u32 %v1355, 4294901760
  %1357 = vmatmul.mubr.f32.gmra.mrb[0].mxu0 %v1356
  %v1358 = vpop.f32.mrb[0].mxu0
  %v1359 = vadd.f32 %v1018, %v1358
  %v1360 = vpop.f32.mrb[0].mxu0
  %1361 = vmatprep.mubr.f32.mxu0 0.0
  %v1362 = vand.u32 %v22, 4294901760
  %v1363 = vsub.f32 %v22, %v1362
  %v1364 = vand.u32 %v1363, 4294901760
  %1365 = vmatmul.mubr.f32.gmra.mrb[0].mxu0 %v1364
  %v1366 = vpop.f32.mrb[0].mxu0
  %v1367 = vadd.f32 %v1025, %v1366
  %v1368 = vpop.f32.mrb[0].mxu0
  %1369 = vmatprep.mubr.f32.mxu0 0.0
  %v1370 = vand.u32 %v23, 4294901760
  %v1371 = vsub.f32 %v23, %v1370
  %v1372 = vand.u32 %v1371, 4294901760
  %1373 = vmatmul.mubr.f32.gmra.mrb[0].mxu0 %v1372
  %v1374 = vpop.f32.mrb[0].mxu0
  %v1375 = vadd.f32 %v1032, %v1374
  %v1376 = vpop.f32.mrb[0].mxu0
  %1377 = vmatprep.mubr.f32.mxu0 0.0
  %v1378 = vand.u32 %v24, 4294901760
  %v1379 = vsub.f32 %v24, %v1378
  %v1380 = vand.u32 %v1379, 4294901760
  %1381 = vmatmul.mubr.f32.gmra.mrb[0].mxu0 %v1380
  %v1382 = vpop.f32.mrb[0].mxu0
  %v1383 = vadd.f32 %v1039, %v1382
  %v1384 = vpop.f32.mrb[0].mxu0
  %1385 = vmatprep.mubr.f32.mxu0 0.0
  %v1386 = vand.u32 %v25, 4294901760
  %v1387 = vsub.f32 %v25, %v1386
  %v1388 = vand.u32 %v1387, 4294901760
  %1389 = vmatmul.mubr.f32.gmra.mrb[0].mxu0 %v1388
  %v1390 = vpop.f32.mrb[0].mxu0
  %v1391 = vadd.f32 %v1046, %v1390
  %v1392 = vpop.f32.mrb[0].mxu0
  %1393 = vmatprep.mubr.f32.mxu0 0.0
  %v1394 = vand.u32 %v26, 4294901760
  %v1395 = vsub.f32 %v26, %v1394
  %v1396 = vand.u32 %v1395, 4294901760
  %1397 = vmatmul.mubr.f32.gmra.mrb[0].mxu0 %v1396
  %v1398 = vpop.f32.mrb[0].mxu0
  %v1399 = vadd.f32 %v1053, %v1398
  %v1400 = vpop.f32.mrb[0].mxu0
  %1401 = vmatprep.mubr.f32.mxu0 0.0
  %v1402 = vand.u32 %v27, 4294901760
  %v1403 = vsub.f32 %v27, %v1402
  %v1404 = vand.u32 %v1403, 4294901760
  %1405 = vmatmul.mubr.f32.gmra.mrb[0].mxu0 %v1404
  %v1406 = vpop.f32.mrb[0].mxu0
  %v1407 = vadd.f32 %v1060, %v1406
  %v1408 = vpop.f32.mrb[0].mxu0
  %1409 = vmatprep.mubr.f32.mxu0 0.0
  %v1410 = vand.u32 %v28, 4294901760
  %v1411 = vsub.f32 %v28, %v1410
  %v1412 = vand.u32 %v1411, 4294901760
  %1413 = vmatmul.mubr.f32.gmra.mrb[0].mxu0 %v1412
  %v1414 = vpop.f32.mrb[0].mxu0
  %v1415 = vadd.f32 %v1067, %v1414
  %v1416 = vpop.f32.mrb[0].mxu0
  %1417 = vmatprep.mubr.f32.mxu0 0.0
  %v1418 = vand.u32 %v29, 4294901760
  %v1419 = vsub.f32 %v29, %v1418
  %v1420 = vand.u32 %v1419, 4294901760
  %1421 = vmatmul.mubr.f32.gmra.mrb[0].mxu0 %v1420
  %v1422 = vpop.f32.mrb[0].mxu0
  %v1423 = vadd.f32 %v1074, %v1422
  %v1424 = vpop.f32.mrb[0].mxu0
  %1425 = vmatprep.mubr.f32.mxu0 0.0
  %v1426 = vand.u32 %v30, 4294901760
  %v1427 = vsub.f32 %v30, %v1426
  %v1428 = vand.u32 %v1427, 4294901760
  %1429 = vmatmul.mubr.f32.gmra.mrb[0].mxu0 %v1428
  %v1430 = vpop.f32.mrb[0].mxu0
  %v1431 = vadd.f32 %v1081, %v1430
  %v1432 = vpop.f32.mrb[0].mxu0
  %1433 = vmatprep.mubr.f32.mxu0 0.0
  %v1434 = vand.u32 %v31, 4294901760
  %v1435 = vsub.f32 %v31, %v1434
  %v1436 = vand.u32 %v1435, 4294901760
  %1437 = vmatmul.mubr.f32.gmra.mrb[0].mxu0 %v1436
  %v1438 = vpop.f32.mrb[0].mxu0
  %v1439 = vadd.f32 %v1088, %v1438
  %v1440 = vpop.f32.mrb[0].mxu0
  %1441 = vmatprep.mubr.f32.mxu0 0.0
  %v1442 = vand.u32 %v32, 4294901760
  %v1443 = vsub.f32 %v32, %v1442
  %v1444 = vand.u32 %v1443, 4294901760
  %1445 = vmatmul.mubr.f32.gmra.mrb[0].mxu0 %v1444
  %v1446 = vpop.f32.mrb[0].mxu0
  %v1447 = vadd.f32 %v1095, %v1446
  %v1448 = vpop.f32.mrb[0].mxu0
  %1449 = vmatprep.mubr.f32.mxu0 0.0
  %v1450 = vand.u32 %v33, 4294901760
  %v1451 = vsub.f32 %v33, %v1450
  %v1452 = vand.u32 %v1451, 4294901760
  %1453 = vmatmul.mubr.f32.gmra.mrb[0].mxu0 %v1452
  %v1454 = vpop.f32.mrb[0].mxu0
  %v1455 = vadd.f32 %v1102, %v1454
  %v1456 = vpop.f32.mrb[0].mxu0
  %1457 = vmatprep.mubr.f32.mxu0 0.0
  %v1458 = vand.u32 %v34, 4294901760
  %v1459 = vsub.f32 %v34, %v1458
  %v1460 = vand.u32 %v1459, 4294901760
  %1461 = vmatmul.mubr.f32.gmra.mrb[0].mxu0 %v1460
  %v1462 = vpop.f32.mrb[0].mxu0
  %v1463 = vadd.f32 %v1109, %v1462
  %v1464 = vpop.f32.mrb[0].mxu0
  %1465 = vmatprep.mubr.f32.mxu0 0.0
  %v1466 = vand.u32 %v35, 4294901760
  %v1467 = vsub.f32 %v35, %v1466
  %v1468 = vand.u32 %v1467, 4294901760
  %1469 = vmatmul.mubr.f32.gmra.mrb[0].mxu0 %v1468
  %v1470 = vpop.f32.mrb[0].mxu0
  %v1471 = vadd.f32 %v1116, %v1470
  %v1472 = vpop.f32.mrb[0].mxu0
  %1473 = vmatprep.mubr.f32.mxu0 0.0
  %v1474 = vand.u32 %v36, 4294901760
  %v1475 = vsub.f32 %v36, %v1474
  %v1476 = vand.u32 %v1475, 4294901760
  %1477 = vmatmul.mubr.f32.gmra.mrb[0].mxu0 %v1476
  %v1478 = vpop.f32.mrb[0].mxu0
  %v1479 = vadd.f32 %v1123, %v1478
  %v1480 = vpop.f32.mrb[0].mxu0
  %1481 = vmatprep.mubr.f32.mxu0 0.0
  %v1482 = vand.u32 %v37, 4294901760
  %v1483 = vsub.f32 %v37, %v1482
  %v1484 = vand.u32 %v1483, 4294901760
  %1485 = vmatmul.mubr.f32.gmra.mrb[0].mxu0 %v1484
  %v1486 = vpop.f32.mrb[0].mxu0
  %v1487 = vadd.f32 %v1130, %v1486
  %v1488 = vpop.f32.mrb[0].mxu0
  %1489 = vmatprep.mubr.f32.mxu0 0.0
  %v1490 = vand.u32 %v38, 4294901760
  %v1491 = vsub.f32 %v38, %v1490
  %v1492 = vand.u32 %v1491, 4294901760
  %1493 = vmatmul.mubr.f32.gmra.mrb[0].mxu0 %v1492
  %v1494 = vpop.f32.mrb[0].mxu0
  %v1495 = vadd.f32 %v1137, %v1494
  %v1496 = vpop.f32.mrb[0].mxu0
  %1497 = vmatprep.mubr.f32.mxu0 0.0
  %v1498 = vand.u32 %v39, 4294901760
  %v1499 = vsub.f32 %v39, %v1498
  %v1500 = vand.u32 %v1499, 4294901760
  %1501 = vmatmul.mubr.f32.gmra.mrb[0].mxu0 %v1500
  %v1502 = vpop.f32.mrb[0].mxu0
  %v1503 = vadd.f32 %v1144, %v1502
  %v1504 = vpop.f32.mrb[0].mxu0
  %1505 = vmatprep.mubr.f32.mxu0 0.0
  %v1506 = vand.u32 %v40, 4294901760
  %v1507 = vsub.f32 %v40, %v1506
  %v1508 = vand.u32 %v1507, 4294901760
  %1509 = vmatmul.mubr.f32.gmra.mrb[0].mxu0 %v1508
  %v1510 = vpop.f32.mrb[0].mxu0
  %v1511 = vadd.f32 %v1151, %v1510
  %v1512 = vpop.f32.mrb[0].mxu0
  %1513 = vmatprep.mubr.f32.mxu0 0.0
  %v1514 = vand.u32 %v41, 4294901760
  %v1515 = vsub.f32 %v41, %v1514
  %v1516 = vand.u32 %v1515, 4294901760
  %1517 = vmatmul.mubr.f32.gmra.mrb[0].mxu0 %v1516
  %v1518 = vpop.f32.mrb[0].mxu0
  %v1519 = vadd.f32 %v1158, %v1518
  %v1520 = vpop.f32.mrb[0].mxu0
  %1521 = vmatprep.mubr.f32.mxu0 0.0
  %v1522 = vand.u32 %v42, 4294901760
  %v1523 = vsub.f32 %v42, %v1522
  %v1524 = vand.u32 %v1523, 4294901760
  %1525 = vmatmul.mubr.f32.gmra.mrb[0].mxu0 %v1524
  %v1526 = vpop.f32.mrb[0].mxu0
  %v1527 = vadd.f32 %v1165, %v1526
  %v1528 = vpop.f32.mrb[0].mxu0
  %1529 = vmatprep.mubr.f32.mxu0 0.0
  %v1530 = vand.u32 %v43, 4294901760
  %v1531 = vsub.f32 %v43, %v1530
  %v1532 = vand.u32 %v1531, 4294901760
  %1533 = vmatmul.mubr.f32.gmra.mrb[0].mxu0 %v1532
  %v1534 = vpop.f32.mrb[0].mxu0
  %v1535 = vadd.f32 %v1172, %v1534
  %v1536 = vpop.f32.mrb[0].mxu0
  %1537 = vmatprep.mubr.f32.mxu0 0.0
  %v1538 = vand.u32 %v44, 4294901760
  %v1539 = vsub.f32 %v44, %v1538
  %v1540 = vand.u32 %v1539, 4294901760
  %1541 = vmatmul.mubr.f32.gmra.mrb[0].mxu0 %v1540
  %v1542 = vpop.f32.mrb[0].mxu0
  %v1543 = vadd.f32 %v1179, %v1542
  %v1544 = vpop.f32.mrb[0].mxu0
  %1545 = vmatprep.mubr.f32.mxu0 0.0
  %v1546 = vand.u32 %v45, 4294901760
  %v1547 = vsub.f32 %v45, %v1546
  %v1548 = vand.u32 %v1547, 4294901760
  %1549 = vmatmul.mubr.f32.gmra.mrb[0].mxu0 %v1548
  %v1550 = vpop.f32.mrb[0].mxu0
  %v1551 = vadd.f32 %v1186, %v1550
  %v1552 = vpop.f32.mrb[0].mxu0
  %1553 = vmatprep.mubr.f32.mxu0 0.0
  %v1554 = vand.u32 %v46, 4294901760
  %v1555 = vsub.f32 %v46, %v1554
  %v1556 = vand.u32 %v1555, 4294901760
  %1557 = vmatmul.mubr.f32.gmra.mrb[0].mxu0 %v1556
  %v1558 = vpop.f32.mrb[0].mxu0
  %v1559 = vadd.f32 %v1193, %v1558
  %v1560 = vpop.f32.mrb[0].mxu0
  %1561 = vmatprep.mubr.f32.mxu0 0.0
  %v1562 = vand.u32 %v47, 4294901760
  %v1563 = vsub.f32 %v47, %v1562
  %v1564 = vand.u32 %v1563, 4294901760
  %1565 = vmatmul.mubr.f32.gmra.mrb[0].mxu0 %v1564
  %v1566 = vpop.f32.mrb[0].mxu0
  %v1567 = vadd.f32 %v1200, %v1566
  %v1568 = vpop.f32.mrb[0].mxu0
  %1569 = vmatprep.mubr.f32.mxu0 0.0
  %v1570 = vand.u32 %v48, 4294901760
  %v1571 = vsub.f32 %v48, %v1570
  %v1572 = vand.u32 %v1571, 4294901760
  %1573 = vmatmul.mubr.f32.gmra.mrb[0].mxu0 %v1572
  %v1574 = vpop.f32.mrb[0].mxu0
  %v1575 = vadd.f32 %v1207, %v1574
  %v1576 = vpop.f32.mrb[0].mxu0
  %1577 = vmatprep.mubr.f32.mxu0 0.0
  %v1578 = vand.u32 %v49, 4294901760
  %v1579 = vsub.f32 %v49, %v1578
  %v1580 = vand.u32 %v1579, 4294901760
  %1581 = vmatmul.mubr.f32.gmra.mrb[0].mxu0 %v1580
  %v1582 = vpop.f32.mrb[0].mxu0
  %v1583 = vadd.f32 %v1214, %v1582
  %v1584 = vpop.f32.mrb[0].mxu0
  %1585 = vdwg.mxu0
  %1586 = vmatprep.subr.mxu0 0.0
  %v1587 = vand.u32 %v50, 4294901760
  %v1588 = vsub.f32 %v50, %v1587
  %v1589 = vand.u32 %v1588, 4294901760
  %1590 = vmatpush1.msra.mxu0 %v1589
  %1591 = vmatprep.subr.mxu0 0.0
  %v1592 = vand.u32 %v51, 4294901760
  %v1593 = vsub.f32 %v51, %v1592
  %v1594 = vand.u32 %v1593, 4294901760
  %1595 = vmatpush1.msra.mxu0 %v1594
  %1596 = vmatprep.subr.mxu0 0.0
  %v1597 = vand.u32 %v52, 4294901760
  %v1598 = vsub.f32 %v52, %v1597
  %v1599 = vand.u32 %v1598, 4294901760
  %1600 = vmatpush1.msra.mxu0 %v1599
  %1601 = vmatprep.subr.mxu0 0.0
  %v1602 = vand.u32 %v53, 4294901760
  %v1603 = vsub.f32 %v53, %v1602
  %v1604 = vand.u32 %v1603, 4294901760
  %1605 = vmatpush1.msra.mxu0 %v1604
  %1606 = vmatprep.subr.mxu0 0.0
  %v1607 = vand.u32 %v54, 4294901760
  %v1608 = vsub.f32 %v54, %v1607
  %v1609 = vand.u32 %v1608, 4294901760
  %1610 = vmatpush1.msra.mxu0 %v1609
  %1611 = vmatprep.subr.mxu0 0.0
  %v1612 = vand.u32 %v55, 4294901760
  %v1613 = vsub.f32 %v55, %v1612
  %v1614 = vand.u32 %v1613, 4294901760
  %1615 = vmatpush1.msra.mxu0 %v1614
  %1616 = vmatprep.subr.mxu0 0.0
  %v1617 = vand.u32 %v56, 4294901760
  %v1618 = vsub.f32 %v56, %v1617
  %v1619 = vand.u32 %v1618, 4294901760
  %1620 = vmatpush1.msra.mxu0 %v1619
  %1621 = vmatprep.subr.mxu0 0.0
  %v1622 = vand.u32 %v57, 4294901760
  %v1623 = vsub.f32 %v57, %v1622
  %v1624 = vand.u32 %v1623, 4294901760
  %1625 = vmatpush1.msra.mxu0 %v1624
  %1626 = vmatprep.subr.mxu0 0.0
  %v1627 = vand.u32 %v58, 4294901760
  %v1628 = vsub.f32 %v58, %v1627
  %v1629 = vand.u32 %v1628, 4294901760
  %1630 = vmatpush1.msra.mxu0 %v1629
  %1631 = vmatprep.subr.mxu0 0.0
  %v1632 = vand.u32 %v59, 4294901760
  %v1633 = vsub.f32 %v59, %v1632
  %v1634 = vand.u32 %v1633, 4294901760
  %1635 = vmatpush1.msra.mxu0 %v1634
  %1636 = vmatprep.subr.mxu0 0.0
  %v1637 = vand.u32 %v60, 4294901760
  %v1638 = vsub.f32 %v60, %v1637
  %v1639 = vand.u32 %v1638, 4294901760
  %1640 = vmatpush1.msra.mxu0 %v1639
  %1641 = vmatprep.subr.mxu0 0.0
  %v1642 = vand.u32 %v61, 4294901760
  %v1643 = vsub.f32 %v61, %v1642
  %v1644 = vand.u32 %v1643, 4294901760
  %1645 = vmatpush1.msra.mxu0 %v1644
  %1646 = vmatprep.subr.mxu0 0.0
  %v1647 = vand.u32 %v62, 4294901760
  %v1648 = vsub.f32 %v62, %v1647
  %v1649 = vand.u32 %v1648, 4294901760
  %1650 = vmatpush1.msra.mxu0 %v1649
  %1651 = vmatprep.subr.mxu0 0.0
  %v1652 = vand.u32 %v63, 4294901760
  %v1653 = vsub.f32 %v63, %v1652
  %v1654 = vand.u32 %v1653, 4294901760
  %1655 = vmatpush1.msra.mxu0 %v1654
  %1656 = vmatprep.subr.mxu0 0.0
  %v1657 = vand.u32 %v64, 4294901760
  %v1658 = vsub.f32 %v64, %v1657
  %v1659 = vand.u32 %v1658, 4294901760
  %1660 = vmatpush1.msra.mxu0 %v1659
  %1661 = vmatprep.subr.mxu0 0.0
  %v1662 = vand.u32 %v65, 4294901760
  %v1663 = vsub.f32 %v65, %v1662
  %v1664 = vand.u32 %v1663, 4294901760
  %1665 = vmatpush1.msra.mxu0 %v1664
  %1666 = vmatprep.subr.mxu0 0.0
  %1667 = vmatpush1.msra.mxu0 0.0
  %1668 = vmatprep.subr.mxu0 0.0
  %1669 = vmatpush1.msra.mxu0 0.0
  %1670 = vmatprep.subr.mxu0 0.0
  %1671 = vmatpush1.msra.mxu0 0.0
  %1672 = vmatprep.subr.mxu0 0.0
  %1673 = vmatpush1.msra.mxu0 0.0
  %1674 = vmatprep.subr.mxu0 0.0
  %1675 = vmatpush1.msra.mxu0 0.0
  %1676 = vmatprep.subr.mxu0 0.0
  %1677 = vmatpush1.msra.mxu0 0.0
  %1678 = vmatprep.subr.mxu0 0.0
  %1679 = vmatpush1.msra.mxu0 0.0
  %1680 = vmatprep.subr.mxu0 0.0
  %1681 = vmatpush1.msra.mxu0 0.0
  %1682 = vmatprep.subr.mxu0 0.0
  %1683 = vmatpush1.msra.mxu0 0.0
  %1684 = vmatprep.subr.mxu0 0.0
  %1685 = vmatpush1.msra.mxu0 0.0
  %1686 = vmatprep.subr.mxu0 0.0
  %1687 = vmatpush1.msra.mxu0 0.0
  %1688 = vmatprep.subr.mxu0 0.0
  %1689 = vmatpush1.msra.mxu0 0.0
  %1690 = vmatprep.subr.mxu0 0.0
  %1691 = vmatpush1.msra.mxu0 0.0
  %1692 = vmatprep.subr.mxu0 0.0
  %1693 = vmatpush1.msra.mxu0 0.0
  %1694 = vmatprep.subr.mxu0 0.0
  %1695 = vmatpush1.msra.mxu0 0.0
  %1696 = vmatprep.subr.mxu0 0.0
  %1697 = vmatpush1.msra.mxu0 0.0
  %1698 = vmatprep.mubr.f32.mxu0 0.0
  %v1699 = vand.u32 %v14, 4294901760
  %1700 = vmatmul.mubr.f32.gmra.mrb[0].mxu0 %v1699
  %v1701 = vpop.f32.mrb[0].mxu0
  %v1702 = vadd.f32 %v1303, %v1701
  %v1703 = vpop.f32.mrb[0].mxu0
  %1704 = vmatprep.mubr.f32.mxu0 0.0
  %v1705 = vand.u32 %v15, 4294901760
  %1706 = vmatmul.mubr.f32.gmra.mrb[0].mxu0 %v1705
  %v1707 = vpop.f32.mrb[0].mxu0
  %v1708 = vadd.f32 %v1311, %v1707
  %v1709 = vpop.f32.mrb[0].mxu0
  %1710 = vmatprep.mubr.f32.mxu0 0.0
  %v1711 = vand.u32 %v16, 4294901760
  %1712 = vmatmul.mubr.f32.gmra.mrb[0].mxu0 %v1711
  %v1713 = vpop.f32.mrb[0].mxu0
  %v1714 = vadd.f32 %v1319, %v1713
  %v1715 = vpop.f32.mrb[0].mxu0
  %1716 = vmatprep.mubr.f32.mxu0 0.0
  %v1717 = vand.u32 %v17, 4294901760
  %1718 = vmatmul.mubr.f32.gmra.mrb[0].mxu0 %v1717
  %v1719 = vpop.f32.mrb[0].mxu0
  %v1720 = vadd.f32 %v1327, %v1719
  %v1721 = vpop.f32.mrb[0].mxu0
  %1722 = vmatprep.mubr.f32.mxu0 0.0
  %v1723 = vand.u32 %v18, 4294901760
  %1724 = vmatmul.mubr.f32.gmra.mrb[0].mxu0 %v1723
  %v1725 = vpop.f32.mrb[0].mxu0
  %v1726 = vadd.f32 %v1335, %v1725
  %v1727 = vpop.f32.mrb[0].mxu0
  %1728 = vmatprep.mubr.f32.mxu0 0.0
  %v1729 = vand.u32 %v19, 4294901760
  %1730 = vmatmul.mubr.f32.gmra.mrb[0].mxu0 %v1729
  %v1731 = vpop.f32.mrb[0].mxu0
  %v1732 = vadd.f32 %v1343, %v1731
  %v1733 = vpop.f32.mrb[0].mxu0
  %1734 = vmatprep.mubr.f32.mxu0 0.0
  %v1735 = vand.u32 %v20, 4294901760
  %1736 = vmatmul.mubr.f32.gmra.mrb[0].mxu0 %v1735
  %v1737 = vpop.f32.mrb[0].mxu0
  %v1738 = vadd.f32 %v1351, %v1737
  %v1739 = vpop.f32.mrb[0].mxu0
  %1740 = vmatprep.mubr.f32.mxu0 0.0
  %v1741 = vand.u32 %v21, 4294901760
  %1742 = vmatmul.mubr.f32.gmra.mrb[0].mxu0 %v1741
  %v1743 = vpop.f32.mrb[0].mxu0
  %v1744 = vadd.f32 %v1359, %v1743
  %v1745 = vpop.f32.mrb[0].mxu0
  %1746 = vmatprep.mubr.f32.mxu0 0.0
  %v1747 = vand.u32 %v22, 4294901760
  %1748 = vmatmul.mubr.f32.gmra.mrb[0].mxu0 %v1747
  %v1749 = vpop.f32.mrb[0].mxu0
  %v1750 = vadd.f32 %v1367, %v1749
  %v1751 = vpop.f32.mrb[0].mxu0
  %1752 = vmatprep.mubr.f32.mxu0 0.0
  %v1753 = vand.u32 %v23, 4294901760
  %1754 = vmatmul.mubr.f32.gmra.mrb[0].mxu0 %v1753
  %v1755 = vpop.f32.mrb[0].mxu0
  %v1756 = vadd.f32 %v1375, %v1755
  %v1757 = vpop.f32.mrb[0].mxu0
  %1758 = vmatprep.mubr.f32.mxu0 0.0
  %v1759 = vand.u32 %v24, 4294901760
  %1760 = vmatmul.mubr.f32.gmra.mrb[0].mxu0 %v1759
  %v1761 = vpop.f32.mrb[0].mxu0
  %v1762 = vadd.f32 %v1383, %v1761
  %v1763 = vpop.f32.mrb[0].mxu0
  %1764 = vmatprep.mubr.f32.mxu0 0.0
  %v1765 = vand.u32 %v25, 4294901760
  %1766 = vmatmul.mubr.f32.gmra.mrb[0].mxu0 %v1765
  %v1767 = vpop.f32.mrb[0].mxu0
  %v1768 = vadd.f32 %v1391, %v1767
  %v1769 = vpop.f32.mrb[0].mxu0
  %1770 = vmatprep.mubr.f32.mxu0 0.0
  %v1771 = vand.u32 %v26, 4294901760
  %1772 = vmatmul.mubr.f32.gmra.mrb[0].mxu0 %v1771
  %v1773 = vpop.f32.mrb[0].mxu0
  %v1774 = vadd.f32 %v1399, %v1773
  %v1775 = vpop.f32.mrb[0].mxu0
  %1776 = vmatprep.mubr.f32.mxu0 0.0
  %v1777 = vand.u32 %v27, 4294901760
  %1778 = vmatmul.mubr.f32.gmra.mrb[0].mxu0 %v1777
  %v1779 = vpop.f32.mrb[0].mxu0
  %v1780 = vadd.f32 %v1407, %v1779
  %v1781 = vpop.f32.mrb[0].mxu0
  %1782 = vmatprep.mubr.f32.mxu0 0.0
  %v1783 = vand.u32 %v28, 4294901760
  %1784 = vmatmul.mubr.f32.gmra.mrb[0].mxu0 %v1783
  %v1785 = vpop.f32.mrb[0].mxu0
  %v1786 = vadd.f32 %v1415, %v1785
  %v1787 = vpop.f32.mrb[0].mxu0
  %1788 = vmatprep.mubr.f32.mxu0 0.0
  %v1789 = vand.u32 %v29, 4294901760
  %1790 = vmatmul.mubr.f32.gmra.mrb[0].mxu0 %v1789
  %v1791 = vpop.f32.mrb[0].mxu0
  %v1792 = vadd.f32 %v1423, %v1791
  %v1793 = vpop.f32.mrb[0].mxu0
  %1794 = vmatprep.mubr.f32.mxu0 0.0
  %v1795 = vand.u32 %v30, 4294901760
  %1796 = vmatmul.mubr.f32.gmra.mrb[0].mxu0 %v1795
  %v1797 = vpop.f32.mrb[0].mxu0
  %v1798 = vadd.f32 %v1431, %v1797
  %v1799 = vpop.f32.mrb[0].mxu0
  %1800 = vmatprep.mubr.f32.mxu0 0.0
  %v1801 = vand.u32 %v31, 4294901760
  %1802 = vmatmul.mubr.f32.gmra.mrb[0].mxu0 %v1801
  %v1803 = vpop.f32.mrb[0].mxu0
  %v1804 = vadd.f32 %v1439, %v1803
  %v1805 = vpop.f32.mrb[0].mxu0
  %1806 = vmatprep.mubr.f32.mxu0 0.0
  %v1807 = vand.u32 %v32, 4294901760
  %1808 = vmatmul.mubr.f32.gmra.mrb[0].mxu0 %v1807
  %v1809 = vpop.f32.mrb[0].mxu0
  %v1810 = vadd.f32 %v1447, %v1809
  %v1811 = vpop.f32.mrb[0].mxu0
  %1812 = vmatprep.mubr.f32.mxu0 0.0
  %v1813 = vand.u32 %v33, 4294901760
  %1814 = vmatmul.mubr.f32.gmra.mrb[0].mxu0 %v1813
  %v1815 = vpop.f32.mrb[0].mxu0
  %v1816 = vadd.f32 %v1455, %v1815
  %v1817 = vpop.f32.mrb[0].mxu0
  %1818 = vmatprep.mubr.f32.mxu0 0.0
  %v1819 = vand.u32 %v34, 4294901760
  %1820 = vmatmul.mubr.f32.gmra.mrb[0].mxu0 %v1819
  %v1821 = vpop.f32.mrb[0].mxu0
  %v1822 = vadd.f32 %v1463, %v1821
  %v1823 = vpop.f32.mrb[0].mxu0
  %1824 = vmatprep.mubr.f32.mxu0 0.0
  %v1825 = vand.u32 %v35, 4294901760
  %1826 = vmatmul.mubr.f32.gmra.mrb[0].mxu0 %v1825
  %v1827 = vpop.f32.mrb[0].mxu0
  %v1828 = vadd.f32 %v1471, %v1827
  %v1829 = vpop.f32.mrb[0].mxu0
  %1830 = vmatprep.mubr.f32.mxu0 0.0
  %v1831 = vand.u32 %v36, 4294901760
  %1832 = vmatmul.mubr.f32.gmra.mrb[0].mxu0 %v1831
  %v1833 = vpop.f32.mrb[0].mxu0
  %v1834 = vadd.f32 %v1479, %v1833
  %v1835 = vpop.f32.mrb[0].mxu0
  %1836 = vmatprep.mubr.f32.mxu0 0.0
  %v1837 = vand.u32 %v37, 4294901760
  %1838 = vmatmul.mubr.f32.gmra.mrb[0].mxu0 %v1837
  %v1839 = vpop.f32.mrb[0].mxu0
  %v1840 = vadd.f32 %v1487, %v1839
  %v1841 = vpop.f32.mrb[0].mxu0
  %1842 = vmatprep.mubr.f32.mxu0 0.0
  %v1843 = vand.u32 %v38, 4294901760
  %1844 = vmatmul.mubr.f32.gmra.mrb[0].mxu0 %v1843
  %v1845 = vpop.f32.mrb[0].mxu0
  %v1846 = vadd.f32 %v1495, %v1845
  %v1847 = vpop.f32.mrb[0].mxu0
  %1848 = vmatprep.mubr.f32.mxu0 0.0
  %v1849 = vand.u32 %v39, 4294901760
  %1850 = vmatmul.mubr.f32.gmra.mrb[0].mxu0 %v1849
  %v1851 = vpop.f32.mrb[0].mxu0
  %v1852 = vadd.f32 %v1503, %v1851
  %v1853 = vpop.f32.mrb[0].mxu0
  %1854 = vmatprep.mubr.f32.mxu0 0.0
  %v1855 = vand.u32 %v40, 4294901760
  %1856 = vmatmul.mubr.f32.gmra.mrb[0].mxu0 %v1855
  %v1857 = vpop.f32.mrb[0].mxu0
  %v1858 = vadd.f32 %v1511, %v1857
  %v1859 = vpop.f32.mrb[0].mxu0
  %1860 = vmatprep.mubr.f32.mxu0 0.0
  %v1861 = vand.u32 %v41, 4294901760
  %1862 = vmatmul.mubr.f32.gmra.mrb[0].mxu0 %v1861
  %v1863 = vpop.f32.mrb[0].mxu0
  %v1864 = vadd.f32 %v1519, %v1863
  %v1865 = vpop.f32.mrb[0].mxu0
  %1866 = vmatprep.mubr.f32.mxu0 0.0
  %v1867 = vand.u32 %v42, 4294901760
  %1868 = vmatmul.mubr.f32.gmra.mrb[0].mxu0 %v1867
  %v1869 = vpop.f32.mrb[0].mxu0
  %v1870 = vadd.f32 %v1527, %v1869
  %v1871 = vpop.f32.mrb[0].mxu0
  %1872 = vmatprep.mubr.f32.mxu0 0.0
  %v1873 = vand.u32 %v43, 4294901760
  %1874 = vmatmul.mubr.f32.gmra.mrb[0].mxu0 %v1873
  %v1875 = vpop.f32.mrb[0].mxu0
  %v1876 = vadd.f32 %v1535, %v1875
  %v1877 = vpop.f32.mrb[0].mxu0
  %1878 = vmatprep.mubr.f32.mxu0 0.0
  %v1879 = vand.u32 %v44, 4294901760
  %1880 = vmatmul.mubr.f32.gmra.mrb[0].mxu0 %v1879
  %v1881 = vpop.f32.mrb[0].mxu0
  %v1882 = vadd.f32 %v1543, %v1881
  %v1883 = vpop.f32.mrb[0].mxu0
  %1884 = vmatprep.mubr.f32.mxu0 0.0
  %v1885 = vand.u32 %v45, 4294901760
  %1886 = vmatmul.mubr.f32.gmra.mrb[0].mxu0 %v1885
  %v1887 = vpop.f32.mrb[0].mxu0
  %v1888 = vadd.f32 %v1551, %v1887
  %v1889 = vpop.f32.mrb[0].mxu0
  %1890 = vmatprep.mubr.f32.mxu0 0.0
  %v1891 = vand.u32 %v46, 4294901760
  %1892 = vmatmul.mubr.f32.gmra.mrb[0].mxu0 %v1891
  %v1893 = vpop.f32.mrb[0].mxu0
  %v1894 = vadd.f32 %v1559, %v1893
  %v1895 = vpop.f32.mrb[0].mxu0
  %1896 = vmatprep.mubr.f32.mxu0 0.0
  %v1897 = vand.u32 %v47, 4294901760
  %1898 = vmatmul.mubr.f32.gmra.mrb[0].mxu0 %v1897
  %v1899 = vpop.f32.mrb[0].mxu0
  %v1900 = vadd.f32 %v1567, %v1899
  %v1901 = vpop.f32.mrb[0].mxu0
  %1902 = vmatprep.mubr.f32.mxu0 0.0
  %v1903 = vand.u32 %v48, 4294901760
  %1904 = vmatmul.mubr.f32.gmra.mrb[0].mxu0 %v1903
  %v1905 = vpop.f32.mrb[0].mxu0
  %v1906 = vadd.f32 %v1575, %v1905
  %v1907 = vpop.f32.mrb[0].mxu0
  %1908 = vmatprep.mubr.f32.mxu0 0.0
  %v1909 = vand.u32 %v49, 4294901760
  %1910 = vmatmul.mubr.f32.gmra.mrb[0].mxu0 %v1909
  %v1911 = vpop.f32.mrb[0].mxu0
  %v1912 = vadd.f32 %v1583, %v1911
  %v1913 = vpop.f32.mrb[0].mxu0
  %1914 = vdwg.mxu0
  %1915 = vmatprep.subr.mxu0 0.0
  %v1916 = vand.u32 %v50, 4294901760
  %1917 = vmatpush1.msra.mxu0 %v1916
  %1918 = vmatprep.subr.mxu0 0.0
  %v1919 = vand.u32 %v51, 4294901760
  %1920 = vmatpush1.msra.mxu0 %v1919
  %1921 = vmatprep.subr.mxu0 0.0
  %v1922 = vand.u32 %v52, 4294901760
  %1923 = vmatpush1.msra.mxu0 %v1922
  %1924 = vmatprep.subr.mxu0 0.0
  %v1925 = vand.u32 %v53, 4294901760
  %1926 = vmatpush1.msra.mxu0 %v1925
  %1927 = vmatprep.subr.mxu0 0.0
  %v1928 = vand.u32 %v54, 4294901760
  %1929 = vmatpush1.msra.mxu0 %v1928
  %1930 = vmatprep.subr.mxu0 0.0
  %v1931 = vand.u32 %v55, 4294901760
  %1932 = vmatpush1.msra.mxu0 %v1931
  %1933 = vmatprep.subr.mxu0 0.0
  %v1934 = vand.u32 %v56, 4294901760
  %1935 = vmatpush1.msra.mxu0 %v1934
  %1936 = vmatprep.subr.mxu0 0.0
  %v1937 = vand.u32 %v57, 4294901760
  %1938 = vmatpush1.msra.mxu0 %v1937
  %1939 = vmatprep.subr.mxu0 0.0
  %v1940 = vand.u32 %v58, 4294901760
  %1941 = vmatpush1.msra.mxu0 %v1940
  %1942 = vmatprep.subr.mxu0 0.0
  %v1943 = vand.u32 %v59, 4294901760
  %1944 = vmatpush1.msra.mxu0 %v1943
  %1945 = vmatprep.subr.mxu0 0.0
  %v1946 = vand.u32 %v60, 4294901760
  %1947 = vmatpush1.msra.mxu0 %v1946
  %1948 = vmatprep.subr.mxu0 0.0
  %v1949 = vand.u32 %v61, 4294901760
  %1950 = vmatpush1.msra.mxu0 %v1949
  %1951 = vmatprep.subr.mxu0 0.0
  %v1952 = vand.u32 %v62, 4294901760
  %1953 = vmatpush1.msra.mxu0 %v1952
  %1954 = vmatprep.subr.mxu0 0.0
  %v1955 = vand.u32 %v63, 4294901760
  %1956 = vmatpush1.msra.mxu0 %v1955
  %1957 = vmatprep.subr.mxu0 0.0
  %v1958 = vand.u32 %v64, 4294901760
  %1959 = vmatpush1.msra.mxu0 %v1958
  %1960 = vmatprep.subr.mxu0 0.0
  %v1961 = vand.u32 %v65, 4294901760
  %1962 = vmatpush1.msra.mxu0 %v1961
  %1963 = vmatprep.subr.mxu0 0.0
  %1964 = vmatpush1.msra.mxu0 0.0
  %1965 = vmatprep.subr.mxu0 0.0
  %1966 = vmatpush1.msra.mxu0 0.0
  %1967 = vmatprep.subr.mxu0 0.0
  %1968 = vmatpush1.msra.mxu0 0.0
  %1969 = vmatprep.subr.mxu0 0.0
  %1970 = vmatpush1.msra.mxu0 0.0
  %1971 = vmatprep.subr.mxu0 0.0
  %1972 = vmatpush1.msra.mxu0 0.0
  %1973 = vmatprep.subr.mxu0 0.0
  %1974 = vmatpush1.msra.mxu0 0.0
  %1975 = vmatprep.subr.mxu0 0.0
  %1976 = vmatpush1.msra.mxu0 0.0
  %1977 = vmatprep.subr.mxu0 0.0
  %1978 = vmatpush1.msra.mxu0 0.0
  %1979 = vmatprep.subr.mxu0 0.0
  %1980 = vmatpush1.msra.mxu0 0.0
  %1981 = vmatprep.subr.mxu0 0.0
  %1982 = vmatpush1.msra.mxu0 0.0
  %1983 = vmatprep.subr.mxu0 0.0
  %1984 = vmatpush1.msra.mxu0 0.0
  %1985 = vmatprep.subr.mxu0 0.0
  %1986 = vmatpush1.msra.mxu0 0.0
  %1987 = vmatprep.subr.mxu0 0.0
  %1988 = vmatpush1.msra.mxu0 0.0
  %1989 = vmatprep.subr.mxu0 0.0
  %1990 = vmatpush1.msra.mxu0 0.0
  %1991 = vmatprep.subr.mxu0 0.0
  %1992 = vmatpush1.msra.mxu0 0.0
  %1993 = vmatprep.subr.mxu0 0.0
  %1994 = vmatpush1.msra.mxu0 0.0
  %1995 = vmatprep.mubr.f32.mxu0 0.0
  %v1996 = vand.u32 %v14, 4294901760
  %1997 = vmatmul.mubr.f32.gmra.mrb[0].mxu0 %v1996
  %v1998 = vpop.f32.mrb[0].mxu0
  %v1999 = vadd.f32 %v1702, %v1998
  %v2000 = vpop.f32.mrb[0].mxu0
  %2001 = vmatprep.mubr.f32.mxu0 0.0
  %v2002 = vand.u32 %v15, 4294901760
  %2003 = vmatmul.mubr.f32.gmra.mrb[0].mxu0 %v2002
  %v2004 = vpop.f32.mrb[0].mxu0
  %v2005 = vadd.f32 %v1708, %v2004
  %v2006 = vpop.f32.mrb[0].mxu0
  %2007 = vmatprep.mubr.f32.mxu0 0.0
  %v2008 = vand.u32 %v16, 4294901760
  %2009 = vmatmul.mubr.f32.gmra.mrb[0].mxu0 %v2008
  %v2010 = vpop.f32.mrb[0].mxu0
  %v2011 = vadd.f32 %v1714, %v2010
  %v2012 = vpop.f32.mrb[0].mxu0
  %2013 = vmatprep.mubr.f32.mxu0 0.0
  %v2014 = vand.u32 %v17, 4294901760
  %2015 = vmatmul.mubr.f32.gmra.mrb[0].mxu0 %v2014
  %v2016 = vpop.f32.mrb[0].mxu0
  %v2017 = vadd.f32 %v1720, %v2016
  %v2018 = vpop.f32.mrb[0].mxu0
  %2019 = vmatprep.mubr.f32.mxu0 0.0
  %v2020 = vand.u32 %v18, 4294901760
  %2021 = vmatmul.mubr.f32.gmra.mrb[0].mxu0 %v2020
  %v2022 = vpop.f32.mrb[0].mxu0
  %v2023 = vadd.f32 %v1726, %v2022
  %v2024 = vpop.f32.mrb[0].mxu0
  %2025 = vmatprep.mubr.f32.mxu0 0.0
  %v2026 = vand.u32 %v19, 4294901760
  %2027 = vmatmul.mubr.f32.gmra.mrb[0].mxu0 %v2026
  %v2028 = vpop.f32.mrb[0].mxu0
  %v2029 = vadd.f32 %v1732, %v2028
  %v2030 = vpop.f32.mrb[0].mxu0
  %2031 = vmatprep.mubr.f32.mxu0 0.0
  %v2032 = vand.u32 %v20, 4294901760
  %2033 = vmatmul.mubr.f32.gmra.mrb[0].mxu0 %v2032
  %v2034 = vpop.f32.mrb[0].mxu0
  %v2035 = vadd.f32 %v1738, %v2034
  %v2036 = vpop.f32.mrb[0].mxu0
  %2037 = vmatprep.mubr.f32.mxu0 0.0
  %v2038 = vand.u32 %v21, 4294901760
  %2039 = vmatmul.mubr.f32.gmra.mrb[0].mxu0 %v2038
  %v2040 = vpop.f32.mrb[0].mxu0
  %v2041 = vadd.f32 %v1744, %v2040
  %v2042 = vpop.f32.mrb[0].mxu0
  %2043 = vmatprep.mubr.f32.mxu0 0.0
  %v2044 = vand.u32 %v22, 4294901760
  %2045 = vmatmul.mubr.f32.gmra.mrb[0].mxu0 %v2044
  %v2046 = vpop.f32.mrb[0].mxu0
  %v2047 = vadd.f32 %v1750, %v2046
  %v2048 = vpop.f32.mrb[0].mxu0
  %2049 = vmatprep.mubr.f32.mxu0 0.0
  %v2050 = vand.u32 %v23, 4294901760
  %2051 = vmatmul.mubr.f32.gmra.mrb[0].mxu0 %v2050
  %v2052 = vpop.f32.mrb[0].mxu0
  %v2053 = vadd.f32 %v1756, %v2052
  %v2054 = vpop.f32.mrb[0].mxu0
  %2055 = vmatprep.mubr.f32.mxu0 0.0
  %v2056 = vand.u32 %v24, 4294901760
  %2057 = vmatmul.mubr.f32.gmra.mrb[0].mxu0 %v2056
  %v2058 = vpop.f32.mrb[0].mxu0
  %v2059 = vadd.f32 %v1762, %v2058
  %v2060 = vpop.f32.mrb[0].mxu0
  %2061 = vmatprep.mubr.f32.mxu0 0.0
  %v2062 = vand.u32 %v25, 4294901760
  %2063 = vmatmul.mubr.f32.gmra.mrb[0].mxu0 %v2062
  %v2064 = vpop.f32.mrb[0].mxu0
  %v2065 = vadd.f32 %v1768, %v2064
  %v2066 = vpop.f32.mrb[0].mxu0
  %2067 = vmatprep.mubr.f32.mxu0 0.0
  %v2068 = vand.u32 %v26, 4294901760
  %2069 = vmatmul.mubr.f32.gmra.mrb[0].mxu0 %v2068
  %v2070 = vpop.f32.mrb[0].mxu0
  %v2071 = vadd.f32 %v1774, %v2070
  %v2072 = vpop.f32.mrb[0].mxu0
  %2073 = vmatprep.mubr.f32.mxu0 0.0
  %v2074 = vand.u32 %v27, 4294901760
  %2075 = vmatmul.mubr.f32.gmra.mrb[0].mxu0 %v2074
  %v2076 = vpop.f32.mrb[0].mxu0
  %v2077 = vadd.f32 %v1780, %v2076
  %v2078 = vpop.f32.mrb[0].mxu0
  %2079 = vmatprep.mubr.f32.mxu0 0.0
  %v2080 = vand.u32 %v28, 4294901760
  %2081 = vmatmul.mubr.f32.gmra.mrb[0].mxu0 %v2080
  %v2082 = vpop.f32.mrb[0].mxu0
  %v2083 = vadd.f32 %v1786, %v2082
  %v2084 = vpop.f32.mrb[0].mxu0
  %2085 = vmatprep.mubr.f32.mxu0 0.0
  %v2086 = vand.u32 %v29, 4294901760
  %2087 = vmatmul.mubr.f32.gmra.mrb[0].mxu0 %v2086
  %v2088 = vpop.f32.mrb[0].mxu0
  %v2089 = vadd.f32 %v1792, %v2088
  %v2090 = vpop.f32.mrb[0].mxu0
  %2091 = vmatprep.mubr.f32.mxu0 0.0
  %v2092 = vand.u32 %v30, 4294901760
  %2093 = vmatmul.mubr.f32.gmra.mrb[0].mxu0 %v2092
  %v2094 = vpop.f32.mrb[0].mxu0
  %v2095 = vadd.f32 %v1798, %v2094
  %v2096 = vpop.f32.mrb[0].mxu0
  %2097 = vmatprep.mubr.f32.mxu0 0.0
  %v2098 = vand.u32 %v31, 4294901760
  %2099 = vmatmul.mubr.f32.gmra.mrb[0].mxu0 %v2098
  %v2100 = vpop.f32.mrb[0].mxu0
  %v2101 = vadd.f32 %v1804, %v2100
  %v2102 = vpop.f32.mrb[0].mxu0
  %2103 = vmatprep.mubr.f32.mxu0 0.0
  %v2104 = vand.u32 %v32, 4294901760
  %2105 = vmatmul.mubr.f32.gmra.mrb[0].mxu0 %v2104
  %v2106 = vpop.f32.mrb[0].mxu0
  %v2107 = vadd.f32 %v1810, %v2106
  %v2108 = vpop.f32.mrb[0].mxu0
  %2109 = vmatprep.mubr.f32.mxu0 0.0
  %v2110 = vand.u32 %v33, 4294901760
  %2111 = vmatmul.mubr.f32.gmra.mrb[0].mxu0 %v2110
  %v2112 = vpop.f32.mrb[0].mxu0
  %v2113 = vadd.f32 %v1816, %v2112
  %v2114 = vpop.f32.mrb[0].mxu0
  %2115 = vmatprep.mubr.f32.mxu0 0.0
  %v2116 = vand.u32 %v34, 4294901760
  %2117 = vmatmul.mubr.f32.gmra.mrb[0].mxu0 %v2116
  %v2118 = vpop.f32.mrb[0].mxu0
  %v2119 = vadd.f32 %v1822, %v2118
  %v2120 = vpop.f32.mrb[0].mxu0
  %2121 = vmatprep.mubr.f32.mxu0 0.0
  %v2122 = vand.u32 %v35, 4294901760
  %2123 = vmatmul.mubr.f32.gmra.mrb[0].mxu0 %v2122
  %v2124 = vpop.f32.mrb[0].mxu0
  %v2125 = vadd.f32 %v1828, %v2124
  %v2126 = vpop.f32.mrb[0].mxu0
  %2127 = vmatprep.mubr.f32.mxu0 0.0
  %v2128 = vand.u32 %v36, 4294901760
  %2129 = vmatmul.mubr.f32.gmra.mrb[0].mxu0 %v2128
  %v2130 = vpop.f32.mrb[0].mxu0
  %v2131 = vadd.f32 %v1834, %v2130
  %v2132 = vpop.f32.mrb[0].mxu0
  %2133 = vmatprep.mubr.f32.mxu0 0.0
  %v2134 = vand.u32 %v37, 4294901760
  %2135 = vmatmul.mubr.f32.gmra.mrb[0].mxu0 %v2134
  %v2136 = vpop.f32.mrb[0].mxu0
  %v2137 = vadd.f32 %v1840, %v2136
  %v2138 = vpop.f32.mrb[0].mxu0
  %2139 = vmatprep.mubr.f32.mxu0 0.0
  %v2140 = vand.u32 %v38, 4294901760
  %2141 = vmatmul.mubr.f32.gmra.mrb[0].mxu0 %v2140
  %v2142 = vpop.f32.mrb[0].mxu0
  %v2143 = vadd.f32 %v1846, %v2142
  %v2144 = vpop.f32.mrb[0].mxu0
  %2145 = vmatprep.mubr.f32.mxu0 0.0
  %v2146 = vand.u32 %v39, 4294901760
  %2147 = vmatmul.mubr.f32.gmra.mrb[0].mxu0 %v2146
  %v2148 = vpop.f32.mrb[0].mxu0
  %v2149 = vadd.f32 %v1852, %v2148
  %v2150 = vpop.f32.mrb[0].mxu0
  %2151 = vmatprep.mubr.f32.mxu0 0.0
  %v2152 = vand.u32 %v40, 4294901760
  %2153 = vmatmul.mubr.f32.gmra.mrb[0].mxu0 %v2152
  %v2154 = vpop.f32.mrb[0].mxu0
  %v2155 = vadd.f32 %v1858, %v2154
  %v2156 = vpop.f32.mrb[0].mxu0
  %2157 = vmatprep.mubr.f32.mxu0 0.0
  %v2158 = vand.u32 %v41, 4294901760
  %2159 = vmatmul.mubr.f32.gmra.mrb[0].mxu0 %v2158
  %v2160 = vpop.f32.mrb[0].mxu0
  %v2161 = vadd.f32 %v1864, %v2160
  %v2162 = vpop.f32.mrb[0].mxu0
  %2163 = vmatprep.mubr.f32.mxu0 0.0
  %v2164 = vand.u32 %v42, 4294901760
  %2165 = vmatmul.mubr.f32.gmra.mrb[0].mxu0 %v2164
  %v2166 = vpop.f32.mrb[0].mxu0
  %v2167 = vadd.f32 %v1870, %v2166
  %v2168 = vpop.f32.mrb[0].mxu0
  %2169 = vmatprep.mubr.f32.mxu0 0.0
  %v2170 = vand.u32 %v43, 4294901760
  %2171 = vmatmul.mubr.f32.gmra.mrb[0].mxu0 %v2170
  %v2172 = vpop.f32.mrb[0].mxu0
  %v2173 = vadd.f32 %v1876, %v2172
  %v2174 = vpop.f32.mrb[0].mxu0
  %2175 = vmatprep.mubr.f32.mxu0 0.0
  %v2176 = vand.u32 %v44, 4294901760
  %2177 = vmatmul.mubr.f32.gmra.mrb[0].mxu0 %v2176
  %v2178 = vpop.f32.mrb[0].mxu0
  %v2179 = vadd.f32 %v1882, %v2178
  %v2180 = vpop.f32.mrb[0].mxu0
  %2181 = vmatprep.mubr.f32.mxu0 0.0
  %v2182 = vand.u32 %v45, 4294901760
  %2183 = vmatmul.mubr.f32.gmra.mrb[0].mxu0 %v2182
  %v2184 = vpop.f32.mrb[0].mxu0
  %v2185 = vadd.f32 %v1888, %v2184
  %v2186 = vpop.f32.mrb[0].mxu0
  %2187 = vmatprep.mubr.f32.mxu0 0.0
  %v2188 = vand.u32 %v46, 4294901760
  %2189 = vmatmul.mubr.f32.gmra.mrb[0].mxu0 %v2188
  %v2190 = vpop.f32.mrb[0].mxu0
  %v2191 = vadd.f32 %v1894, %v2190
  %v2192 = vpop.f32.mrb[0].mxu0
  %2193 = vmatprep.mubr.f32.mxu0 0.0
  %v2194 = vand.u32 %v47, 4294901760
  %2195 = vmatmul.mubr.f32.gmra.mrb[0].mxu0 %v2194
  %v2196 = vpop.f32.mrb[0].mxu0
  %v2197 = vadd.f32 %v1900, %v2196
  %v2198 = vpop.f32.mrb[0].mxu0
  %2199 = vmatprep.mubr.f32.mxu0 0.0
  %v2200 = vand.u32 %v48, 4294901760
  %2201 = vmatmul.mubr.f32.gmra.mrb[0].mxu0 %v2200
  %v2202 = vpop.f32.mrb[0].mxu0
  %v2203 = vadd.f32 %v1906, %v2202
  %v2204 = vpop.f32.mrb[0].mxu0
  %2205 = vmatprep.mubr.f32.mxu0 0.0
  %v2206 = vand.u32 %v49, 4294901760
  %2207 = vmatmul.mubr.f32.gmra.mrb[0].mxu0 %v2206
  %v2208 = vpop.f32.mrb[0].mxu0
  %v2209 = vadd.f32 %v1912, %v2208
  %v2210 = vpop.f32.mrb[0].mxu0
  %2211 = vdwg.mxu0
  %2212 = vst [vmem:[%s2] sm:$0xff] %v1999
  %2213 = vst [vmem:[%s2 + $0x8] sm:$0xff] %v2005
  %2214 = vst [vmem:[%s2 + $0x10] sm:$0xff] %v2011
  %2215 = vst [vmem:[%s2 + $0x18] sm:$0xff] %v2017
  %2216 = vst [vmem:[%s2 + $0x20] sm:$0xff] %v2023
  %2217 = vst [vmem:[%s2 + $0x28] sm:$0xff] %v2029
  %2218 = vst [vmem:[%s2 + $0x30] sm:$0xff] %v2035
  %2219 = vst [vmem:[%s2 + $0x38] sm:$0xff] %v2041
  %2220 = vst [vmem:[%s2 + $0x40] sm:$0xff] %v2047
  %2221 = vst [vmem:[%s2 + $0x48] sm:$0xff] %v2053
  %2222 = vst [vmem:[%s2 + $0x50] sm:$0xff] %v2059
  %2223 = vst [vmem:[%s2 + $0x58] sm:$0xff] %v2065
  %2224 = vst [vmem:[%s2 + $0x60] sm:$0xff] %v2071
  %2225 = vst [vmem:[%s2 + $0x68] sm:$0xff] %v2077
  %2226 = vst [vmem:[%s2 + $0x70] sm:$0xff] %v2083
  %2227 = vst [vmem:[%s2 + $0x78] sm:$0xff] %v2089
  %2228 = vst [vmem:[%s2 + $0x80] sm:$0xff] %v2095
  %2229 = vst [vmem:[%s2 + $0x88] sm:$0xff] %v2101
  %2230 = vst [vmem:[%s2 + $0x90] sm:$0xff] %v2107
  %2231 = vst [vmem:[%s2 + $0x98] sm:$0xff] %v2113
  %2232 = vst [vmem:[%s2 + $0xa0] sm:$0xff] %v2119
  %2233 = vst [vmem:[%s2 + $0xa8] sm:$0xff] %v2125
  %2234 = vst [vmem:[%s2 + $0xb0] sm:$0xff] %v2131
  %2235 = vst [vmem:[%s2 + $0xb8] sm:$0xff] %v2137
  %2236 = vst [vmem:[%s2 + $0xc0] sm:$0xff] %v2143
  %2237 = vst [vmem:[%s2 + $0xc8] sm:$0xff] %v2149
  %2238 = vst [vmem:[%s2 + $0xd0] sm:$0xff] %v2155
  %2239 = vst [vmem:[%s2 + $0xd8] sm:$0xff] %v2161
  %2240 = vst [vmem:[%s2 + $0xe0] sm:$0xff] %v2167
  %2241 = vst [vmem:[%s2 + $0xe8] sm:$0xff] %v2173
  %2242 = vst [vmem:[%s2 + $0xf0] sm:$0xff] %v2179
  %2243 = vst [vmem:[%s2 + $0xf8] sm:$0xff] %v2185
  %2244 = vst [vmem:[%s2 + $0x100] sm:$0xff] %v2191
  %2245 = vst [vmem:[%s2 + $0x108] sm:$0xff] %v2197
  %2246 = vst [vmem:[%s2 + $0x110] sm:$0xff] %v2203
  %2247 = vst [vmem:[%s2 + $0x118] sm:$0xff] %v2209
  %v2248 = vmax.f32 %v1999, %v2053
  %v2249 = vmax.f32 %v2005, %v2059
  %v2250 = vmax.f32 %v2011, %v2065
  %v2251 = vmax.f32 %v2017, %v2071
  %v2252 = vmax.f32 %v2023, %v2077
  %v2253 = vmax.f32 %v2029, %v2083
  %v2254 = vmax.f32 %v2035, %v2089
  %v2255 = vmax.f32 %v2041, %v2095
  %v2256 = vmax.f32 %v2047, %v2101
  %v2257 = vmax.f32 %v2107, %v2161
  %v2258 = vmax.f32 %v2113, %v2167
  %v2259 = vmax.f32 %v2119, %v2173
  %v2260 = vmax.f32 %v2125, %v2179
  %v2261 = vmax.f32 %v2131, %v2185
  %v2262 = vmax.f32 %v2137, %v2191
  %v2263 = vmax.f32 %v2143, %v2197
  %v2264 = vmax.f32 %v2149, %v2203
  %v2265 = vmax.f32 %v2155, %v2209
  %v2266 = vmax.f32 %v2248, %v2257
  %v2267 = vmax.f32 %v2249, %v2258
  %v2268 = vmax.f32 %v2250, %v2259
  %v2269 = vmax.f32 %v2251, %v2260
  %v2270 = vmax.f32 %v2252, %v2261
  %v2271 = vmax.f32 %v2253, %v2262
  %v2272 = vmax.f32 %v2254, %v2263
  %v2273 = vmax.f32 %v2255, %v2264
  %v2274 = vmax.f32 %v2256, %v2265
  %v2275 = vmax.f32 %v2266, 0.0
  %v2276 = vmax.f32 %v2267, 0.0
  %v2277 = vmax.f32 %v2268, 0.0
  %v2278 = vmax.f32 %v2269, 0.0
  %v2279 = vmax.f32 %v2270, 0.0
  %v2280 = vmax.f32 %v2271, 0.0
  %v2281 = vmax.f32 %v2272, 0.0
  %v2282 = vmax.f32 %v2273, 0.0
  %v2283 = vmax.f32 %v2274, 0.0
  %v2284 = vadd.f32 %v2275, %v2276
  %v2285 = vadd.f32 %v2284, %v2277
  %v2286 = vadd.f32 %v2285, %v2278
  %v2287 = vadd.f32 %v2286, %v2279
  %v2288 = vadd.f32 %v2287, %v2280
  %v2289 = vadd.f32 %v2288, %v2281
  %v2290 = vadd.f32 %v2289, %v2282
  %v2291 = vadd.f32 %v2290, %v2283
  %v2292 = vrot.slane %v2291, 4
  %v2293 = vadd.f32 %v2291, %v2292
  %v2294 = vrot.slane %v2293, 2
  %v2295 = vadd.f32 %v2293, %v2294
  %v2296 = vrot.slane %v2295, 1
  %v2297 = vadd.f32 %v2295, %v2296
  %v2298 = vrcp.pop 72.0
  %v2299 = vmul.f32 %v2297, %v2298
  %v2300 = vsub.f32 %v2275, %v2299
  %v2301 = vsub.f32 %v2276, %v2299
  %v2302 = vsub.f32 %v2277, %v2299
  %v2303 = vsub.f32 %v2278, %v2299
  %v2304 = vsub.f32 %v2279, %v2299
  %v2305 = vsub.f32 %v2280, %v2299
  %v2306 = vsub.f32 %v2281, %v2299
  %v2307 = vsub.f32 %v2282, %v2299
  %v2308 = vsub.f32 %v2283, %v2299
  %v2309 = vmul.f32 %v2300, %v2300
  %v2310 = vmul.f32 %v2301, %v2301
  %v2311 = vmul.f32 %v2302, %v2302
  %v2312 = vmul.f32 %v2303, %v2303
  %v2313 = vmul.f32 %v2304, %v2304
  %v2314 = vmul.f32 %v2305, %v2305
  %v2315 = vmul.f32 %v2306, %v2306
  %v2316 = vmul.f32 %v2307, %v2307
  %v2317 = vmul.f32 %v2308, %v2308
  %v2318 = vadd.f32 %v2309, %v2310
  %v2319 = vadd.f32 %v2318, %v2311
  %v2320 = vadd.f32 %v2319, %v2312
  %v2321 = vadd.f32 %v2320, %v2313
  %v2322 = vadd.f32 %v2321, %v2314
  %v2323 = vadd.f32 %v2322, %v2315
  %v2324 = vadd.f32 %v2323, %v2316
  %v2325 = vadd.f32 %v2324, %v2317
  %v2326 = vrot.slane %v2325, 4
  %v2327 = vadd.f32 %v2325, %v2326
  %v2328 = vrot.slane %v2327, 2
  %v2329 = vadd.f32 %v2327, %v2328
  %v2330 = vrot.slane %v2329, 1
  %v2331 = vadd.f32 %v2329, %v2330
  %v2332 = vmul.f32 %v2331, %v2298
  %v2333 = vadd.f32 %v2332, 1e-05
  %v2334 = vrsqrt.pop %v2333
  %v2335 = vmul.f32 %v2300, %v2334
  %v2336 = vmul.f32 %v2301, %v2334
  %v2337 = vmul.f32 %v2302, %v2334
  %v2338 = vmul.f32 %v2303, %v2334
  %v2339 = vmul.f32 %v2304, %v2334
  %v2340 = vmul.f32 %v2305, %v2334
  %v2341 = vmul.f32 %v2306, %v2334
  %v2342 = vmul.f32 %v2307, %v2334
  %v2343 = vmul.f32 %v2308, %v2334
  %2344 = vst [vmem:[%s3] sm:$0xff] %v2335
  %2345 = vst [vmem:[%s3 + $0x8] sm:$0xff] %v2336
  %2346 = vst [vmem:[%s3 + $0x10] sm:$0xff] %v2337
  %2347 = vst [vmem:[%s3 + $0x18] sm:$0xff] %v2338
  %2348 = vst [vmem:[%s3 + $0x20] sm:$0xff] %v2339
  %2349 = vst [vmem:[%s3 + $0x28] sm:$0xff] %v2340
  %2350 = vst [vmem:[%s3 + $0x30] sm:$0xff] %v2341
  %2351 = vst [vmem:[%s3 + $0x38] sm:$0xff] %v2342
  %2352 = vst [vmem:[%s3 + $0x40] sm:$0xff] %v2343
  %2353 = vst [vmem:[%s4] sm:$0x1] %v2299
  %2354 = vst [vmem:[%s4 + $0x1] sm:$0x1] %v2334
  // Predicated region
  $region10: #{net_forward.1} parent=0 // pred_check
    _
  $region11: #{net_forward.1} parent=0 // pred_check_branch
    %2356 = sbr.rel (0) target = $region13
  $region12: #{net_forward.1} parent=0 // pred_region
    _
  $region13: #{net_forward.1} parent=0 // pred_fallthru
    _
  // Predicated region
  $region14: #{net_forward.1} parent=0 // pred_check
    _
  $region15: #{net_forward.1} parent=0 // pred_check_branch
    %2358 = sbr.rel (0) target = $region17
  $region16: #{net_forward.1} parent=0 // pred_region
    _
  $region17: #{net_forward.1} parent=0 // pred_fallthru
    _
  // Predicated region
  $region18: #{net_forward.1} parent=0 // pred_check
    _
  $region19: #{net_forward.1} parent=0 // pred_check_branch
    %2360 = sbr.rel (0) target = $region21
  $region20: #{net_forward.1} parent=0 // pred_region
    _
  $region21: #{net_forward.1} parent=0 // pred_fallthru
    _
  // Predicated region
  $region22: #{net_forward.1} parent=0 // pred_check
    _
  $region23: #{net_forward.1} parent=0 // pred_check_branch
    %2362 = sbr.rel (0) target = $region25
  $region24: #{net_forward.1} parent=0 // pred_region
    _
  $region25: #{net_forward.1} parent=0 // pred_fallthru
    _
  // Predicated region
  $region26: #{net_forward.1} parent=0 // pred_check
    _
  $region27: #{net_forward.1} parent=0 // pred_check_branch
    %2364 = sbr.rel (0) target = $region29
  $region28: #{net_forward.1} parent=0 // pred_region
    _
  $region29: #{net_forward.1} parent=0 // pred_fallthru
    _
  // Predicated region
  $region30: #{net_forward.1} parent=0 // pred_check
    _
  $region31: #{net_forward.1} parent=0 // pred_check_branch
    %2366 = sbr.rel (0) target = $region33
  $region32: #{net_forward.1} parent=0 // pred_region
    _
  $region33: #{net_forward.1} parent=0 // pred_fallthru
    _

</llo_original>
